<compile_context>
chip_gen: v7x
topology: tpu7x:2x2x1
jax: 0.10.0
libtpu: 0.0.40
codegen_flags: <defaults>
</compile_context>

<pallas_src>
import functools
import math

import jax
import jax.numpy as jnp
from jax.experimental import pallas as pl
from jax.experimental.pallas import tpu as pltpu


# ----------------------------------------------------------------------------------------
# Small in-kernel helpers
# ----------------------------------------------------------------------------------------

def _erf_poly(x):
    """erf via Abramowitz & Stegun 7.1.26 (|err| <= 1.5e-7). Uses only VPU/EUP ops so it
    lowers robustly in Mosaic (avoids relying on a lax.erf lowering)."""
    a1, a2, a3, a4, a5 = 0.254829592, -0.284496736, 1.421413741, -1.453152027, 1.061405429
    p = 0.3275911
    ax = jnp.abs(x)
    t = 1.0 / (1.0 + p * ax)
    poly = ((((a5 * t + a4) * t + a3) * t + a2) * t + a1) * t
    y = 1.0 - poly * jnp.exp(-ax * ax)
    return jnp.where(x >= 0.0, y, -y)


def _gelu_exact(x):
    """Exact (erf-based) GELU, matching PyTorch F.gelu(approximate='none')."""
    return 0.5 * x * (1.0 + _erf_poly(x * 0.7071067811865476))


# ----------------------------------------------------------------------------------------
# Fused per-layer kernel: cross-attention + GEGLU FF (+ optional fused RMSNorm epilogue)
# ----------------------------------------------------------------------------------------

def _layer_kernel(lat_ref, x_ref, mask_ref,
                  wq_ref, wk_ref, wv_ref, wo_ref,
                  w1a_ref, b1a_ref, w1g_ref, b1g_ref, w2_ref, b2_ref, g_ref,
                  o_ref, *, heads, dim_head, scale, fuse_norm, eps):
    lat = lat_ref[0].astype(jnp.float32)          # [L, D]
    xs = x_ref[0].astype(jnp.float32)             # [N, D]
    mask = mask_ref[0]                            # [1, T]  (T = L + N, 1.0 keep / 0.0 drop)

    # cross_attn_include_queries=True: context = [latents ; x], built in VMEM (no HBM concat).
    ctx = jnp.concatenate([lat, xs], axis=0)      # [T, D]

    # Fused projections across all heads (single wide MXU matmuls). Scale folded into Q.
    q = jnp.dot(lat, wq_ref[...], preferred_element_type=jnp.float32) * jnp.float32(scale)
    k = jnp.dot(ctx, wk_ref[...], preferred_element_type=jnp.float32)    # [T, H*dh]
    v = jnp.dot(ctx, wv_ref[...], preferred_element_type=jnp.float32)    # [T, H*dh]

    # Additive mask bias, computed once (not per head).
    bias = jnp.where(mask > 0.5, jnp.float32(0.0), jnp.float32(-1e30))   # [1, T]

    outs = []
    for h in range(heads):                        # static unroll; heads is small
        lo, hi = h * dim_head, (h + 1) * dim_head
        qh, kh, vh = q[:, lo:hi], k[:, lo:hi], v[:, lo:hi]
        # scores = q_h @ k_h^T via NT dot_general (no explicit transpose).
        s = jax.lax.dot_general(qh, kh, (((1,), (1,)), ((), ())),
                                preferred_element_type=jnp.float32) + bias   # [L, T]
        m = jnp.max(s, axis=-1, keepdims=True)
        p = jnp.exp(s - m)
        l = jnp.sum(p, axis=-1, keepdims=True)
        outs.append(jnp.dot(p, vh, preferred_element_type=jnp.float32) / l)  # [L, dh]
    o = jnp.concatenate(outs, axis=-1)                                        # [L, H*dh]

    # Output projection (one wide matmul) + residual.
    h1 = jnp.dot(o, wo_ref[...], preferred_element_type=jnp.float32) + lat    # [L, D]

    # GEGLU feed-forward + residual, staying in VMEM.
    a = jnp.dot(h1, w1a_ref[...], preferred_element_type=jnp.float32) + b1a_ref[...]
    g = jnp.dot(h1, w1g_ref[...], preferred_element_type=jnp.float32) + b1g_ref[...]
    hh = _gelu_exact(g) * a
    y = jnp.dot(hh, w2_ref[...], preferred_element_type=jnp.float32) + b2_ref[...] + h1

    if fuse_norm:
        # RMSNorm epilogue: F.normalize(y, -1) * sqrt(D) * gamma, with sqrt(D) folded into
        # g_ref and 1/max(||y||, eps) == min(rsqrt(sum y^2), 1/eps) (EUP rsqrt).
        ss = jnp.sum(y * y, axis=-1, keepdims=True)
        inv = jnp.minimum(jax.lax.rsqrt(ss), jnp.float32(1.0 / eps))
        y = y * inv * g_ref[...]
    o_ref[0] = y.astype(o_ref.dtype)


def perceiver_layer(latents, x_ctx, mask_f, attn_w, ff_w, *, heads, dim_head,
                    gamma_scaled=None, eps=1e-12):
    B, L, D = latents.shape
    N = x_ctx.shape[1]
    T = L + N
    HD = heads * dim_head
    Dff = ff_w["w1a"].shape[1]
    fuse_norm = gamma_scaled is not None
    if gamma_scaled is None:
        gamma_scaled = jnp.ones((1, D), jnp.float32)     # unused when fuse_norm=False

    kernel = functools.partial(
        _layer_kernel, heads=heads, dim_head=dim_head,
        scale=float(dim_head) ** -0.5, fuse_norm=fuse_norm, eps=eps)

    const2 = lambda b: (0, 0)
    return pl.pallas_call(
        kernel,
        out_shape=jax.ShapeDtypeStruct((B, L, D), latents.dtype),
        grid_spec=pltpu.PrefetchScalarGridSpec(
            num_scalar_prefetch=0,
            grid=(B,),
            in_specs=[
                pl.BlockSpec((1, L, D), lambda b: (b, 0, 0)),
                pl.BlockSpec((1, N, D), lambda b: (b, 0, 0)),
                pl.BlockSpec((1, 1, T), lambda b: (b, 0, 0)),
                # constant index_maps -> weights DMA'd once, resident across the batch grid
                pl.BlockSpec((D, HD), const2),
                pl.BlockSpec((D, HD), const2),
                pl.BlockSpec((D, HD), const2),
                pl.BlockSpec((HD, D), const2),
                pl.BlockSpec((D, Dff), const2),
                pl.BlockSpec((1, Dff), const2),
                pl.BlockSpec((D, Dff), const2),
                pl.BlockSpec((1, Dff), const2),
                pl.BlockSpec((Dff, D), const2),
                pl.BlockSpec((1, D), const2),
                pl.BlockSpec((1, D), const2),
            ],
            out_specs=pl.BlockSpec((1, L, D), lambda b: (b, 0, 0)),
        ),
        compiler_params=pltpu.CompilerParams(
            dimension_semantics=("parallel",),
            vmem_limit_bytes=32 << 20,
        ),
    )(latents, x_ctx, mask_f,
      attn_w["wq"], attn_w["wk"], attn_w["wv"], attn_w["wo"],
      ff_w["w1a"], ff_w["b1a"], ff_w["w1g"], ff_w["b1g"], ff_w["w2"], ff_w["b2"],
      gamma_scaled)


# ----------------------------------------------------------------------------------------
# Standalone RMSNorm kernel (pad-free, large-tile, rsqrt path) — general-purpose version
# ----------------------------------------------------------------------------------------

def _rmsnorm_kernel(x_ref, g_ref, o_ref, *, eps):
    x = x_ref[...].astype(jnp.float32)                     # [tile_rows, dim]
    ss = jnp.sum(x * x, axis=-1, keepdims=True)            # [tile_rows, 1]
    # 1 / max(||x||, eps) == min(rsqrt(ss), 1/eps); rsqrt runs on the EUP slot.
    inv = jnp.minimum(jax.lax.rsqrt(ss), jnp.float32(1.0 / eps))
    o_ref[...] = (x * inv * g_ref[...]).astype(o_ref.dtype)   # gamma pre-scaled by sqrt(dim)


def _pick_tile_rows(rows, dim, *, itemsize=4, target_block_bytes=4 << 20, max_tile_rows=2048):
    # ~4 MiB blocks keep the double-buffered (in+out) footprint well under VMEM limits while
    # being large enough to hit most of the HBM roofline (per-step overhead amortized).
    tr = target_block_bytes // max(1, dim * itemsize)
    tr = max(8, min(tr, max_tile_rows))
    tr = (tr // 8) * 8                       # sublane (8) alignment
    if rows <= tr:
        return rows                          # single full-extent block
    return tr


def rmsnorm(x, gamma, *, eps=1e-12, max_tile_rows=2048):
    """x: [..., dim]; gamma: [dim].  out = F.normalize(x, -1) * sqrt(dim) * gamma."""
    orig_shape = x.shape
    dim = orig_shape[-1]
    rows = math.prod(orig_shape[:-1]) if len(orig_shape) > 1 else 1
    x2d = x.reshape(rows, dim)
    # Fold sqrt(dim) into gamma once (saves a full-tile multiply per block).
    g2d = (gamma.astype(jnp.float32) * (float(dim) ** 0.5)).reshape(1, dim)

    tile_rows = _pick_tile_rows(rows, dim, itemsize=x.dtype.itemsize,
                                max_tile_rows=max_tile_rows)
    grid = (pl.cdiv(rows, tile_rows),)       # no padding: partial last block is masked

    out2d = pl.pallas_call(
        functools.partial(_rmsnorm_kernel, eps=eps),
        out_shape=jax.ShapeDtypeStruct((rows, dim), x.dtype),
        grid_spec=pltpu.PrefetchScalarGridSpec(
            num_scalar_prefetch=0,
            grid=grid,
            in_specs=[
                pl.BlockSpec((tile_rows, dim), lambda i: (i, 0)),
                # constant index_map -> gamma fetched once and kept resident in VMEM
                pl.BlockSpec((1, dim), lambda i: (0, 0)),
            ],
            out_specs=pl.BlockSpec((tile_rows, dim), lambda i: (i, 0)),
        ),
        compiler_params=pltpu.CompilerParams(
            dimension_semantics=("parallel",),
            vmem_limit_bytes=32 << 20,
        ),
    )(x2d, g2d)
    return out2d.reshape(orig_shape)


def rmsnorm_reference(x, gamma, eps=1e-12):
    x32 = x.astype(jnp.float32)
    dim = x.shape[-1]
    norm = jnp.sqrt(jnp.sum(x32 * x32, axis=-1, keepdims=True))
    out = x32 / jnp.maximum(norm, eps) * (float(dim) ** 0.5) * gamma.astype(jnp.float32)
    return out.astype(x.dtype)


# ----------------------------------------------------------------------------------------
# PerceiverResampler forward (wrapper) + parameter init + pure-JAX reference
# ----------------------------------------------------------------------------------------

def init_params(key, *, hidden, num_latents, depth, heads, dim_head, ff_mult):
    dff = int(hidden * ff_mult * 2 / 3)
    dim_inner = heads * dim_head
    keys = jax.random.split(key, 2 + depth)
    params = {
        "latents": 0.02 * jax.random.normal(keys[0], (num_latents, hidden), jnp.float32),
        "gamma": jnp.ones((hidden,), jnp.float32),
        "layers": [],
    }
    for li in range(depth):
        k = jax.random.split(keys[2 + li], 10)
        s_in = 1.0 / (hidden ** 0.5)
        s_out = 1.0 / (dim_inner ** 0.5)
        s_ff2 = 1.0 / (dff ** 0.5)
        attn = {
            "wq": s_in * jax.random.normal(k[0], (hidden, dim_inner), jnp.float32),
            "wk": s_in * jax.random.normal(k[1], (hidden, dim_inner), jnp.float32),
            "wv": s_in * jax.random.normal(k[2], (hidden, dim_inner), jnp.float32),
            "wo": s_out * jax.random.normal(k[3], (dim_inner, hidden), jnp.float32),
        }
        ff = {
            "w1a": s_in * jax.random.normal(k[4], (hidden, dff), jnp.float32),
            "b1a": s_in * jax.random.normal(k[5], (1, dff), jnp.float32),
            "w1g": s_in * jax.random.normal(k[6], (hidden, dff), jnp.float32),
            "b1g": s_in * jax.random.normal(k[7], (1, dff), jnp.float32),
            "w2": s_ff2 * jax.random.normal(k[8], (dff, hidden), jnp.float32),
            "b2": s_ff2 * jax.random.normal(k[9], (1, hidden), jnp.float32),
        }
        params["layers"].append({"attn": attn, "ff": ff})
    return params


def perceiver_resampler_forward(params, x, x_mask, *, heads, dim_head, eps=1e-12):
    """x: [B, D, N] (channels-first as in the torch module); x_mask: [B, 1, N]."""
    B, D, N = x.shape
    L = params["latents"].shape[0]
    xt = jnp.transpose(x, (0, 2, 1))                                       # b d n -> b n d
    latents = jnp.broadcast_to(params["latents"][None], (B, L, D)).astype(x.dtype)
    latents_mask = jnp.ones((B, 1, L), dtype=x_mask.dtype)
    mask_f = jnp.concatenate([latents_mask, x_mask], axis=-1).astype(jnp.float32)  # [B,1,L+N]
    gamma_scaled = (params["gamma"].astype(jnp.float32) * (float(D) ** 0.5)).reshape(1, D)

    n_layers = len(params["layers"])
    for li, layer in enumerate(params["layers"]):
        is_last = li == n_layers - 1
        # Final RMSNorm is fused into the last layer kernel's epilogue (no standalone pass).
        latents = perceiver_layer(
            latents, xt, mask_f, layer["attn"], layer["ff"],
            heads=heads, dim_head=dim_head,
            gamma_scaled=gamma_scaled if is_last else None, eps=eps)
    out = jnp.transpose(latents, (0, 2, 1))                                # b n d -> b d n
    return out, latents_mask


def reference_forward(params, x, x_mask, *, heads, dim_head, eps=1e-12):
    HI = jax.lax.Precision.HIGHEST
    B, D, N = x.shape
    L = params["latents"].shape[0]
    xt = jnp.transpose(x, (0, 2, 1))
    latents = jnp.broadcast_to(params["latents"][None], (B, L, D))
    latents_mask = jnp.ones((B, 1, L), dtype=x_mask.dtype)
    keep = jnp.concatenate([latents_mask, x_mask], axis=-1)[:, 0, :] > 0.5   # [B, L+N]
    scale = float(dim_head) ** -0.5
    for layer in params["layers"]:
        w = layer["attn"]
        ctx = jnp.concatenate([latents, xt], axis=1)       # cross_attn_include_queries=True
        T = ctx.shape[1]
        q = jnp.einsum("bld,de->ble", latents, w["wq"], precision=HI)
        k = jnp.einsum("btd,de->bte", ctx, w["wk"], precision=HI)
        v = jnp.einsum("btd,de->bte", ctx, w["wv"], precision=HI)
        q = q.reshape(B, L, heads, dim_head).transpose(0, 2, 1, 3)
        k = k.reshape(B, T, heads, dim_head).transpose(0, 2, 1, 3)
        v = v.reshape(B, T, heads, dim_head).transpose(0, 2, 1, 3)
        s = jnp.einsum("bhld,bhtd->bhlt", q, k, precision=HI) * scale
        s = jnp.where(keep[:, None, None, :], s, jnp.float32(-1e30))
        p = jax.nn.softmax(s, axis=-1)
        o = jnp.einsum("bhlt,bhtd->bhld", p, v, precision=HI)
        o = o.transpose(0, 2, 1, 3).reshape(B, L, heads * dim_head)
        latents = jnp.einsum("ble,ed->bld", o, w["wo"], precision=HI) + latents
        f = layer["ff"]
        a = jnp.einsum("bld,df->blf", latents, f["w1a"], precision=HI) + f["b1a"]
        g = jnp.einsum("bld,df->blf", latents, f["w1g"], precision=HI) + f["b1g"]
        h = jax.nn.gelu(g, approximate=False) * a
        y = jnp.einsum("blf,fd->bld", h, f["w2"], precision=HI) + f["b2"]
        latents = y + latents
    norm = jnp.sqrt(jnp.sum(latents * latents, axis=-1, keepdims=True))
    latents = latents / jnp.maximum(norm, eps) * (float(D) ** 0.5) * params["gamma"]
    return jnp.transpose(latents, (0, 2, 1)), latents_mask


# ----------------------------------------------------------------------------------------
# Test
# ----------------------------------------------------------------------------------------

if __name__ == "__main__":
    key = jax.random.PRNGKey(0)
    batch, hidden, seq = 2, 32, 8
    num_latents, depth, heads, dim_head, ff_mult = 8, 2, 4, 16, 4

    k_par, k_x, k_rms = jax.random.split(key, 3)
    params = init_params(k_par, hidden=hidden, num_latents=num_latents, depth=depth,
                         heads=heads, dim_head=dim_head, ff_mult=ff_mult)

    x = jax.random.normal(k_x, (batch, hidden, seq), jnp.float32)            # [b, d, n]
    lengths = jnp.array([seq, 5], dtype=jnp.int32)                           # ragged mask
    x_mask = (jnp.arange(seq)[None, :] < lengths[:, None]).astype(jnp.float32)[:, None, :]

    out, out_mask = perceiver_resampler_forward(params, x, x_mask,
                                                heads=heads, dim_head=dim_head)
    out = jax.block_until_ready(out)

    ref, ref_mask = reference_forward(params, x, x_mask, heads=heads, dim_head=dim_head)
    assert out.shape == (batch, hidden, num_latents)
    assert out_mask.shape == (batch, 1, num_latents)
    assert jnp.allclose(out, ref, atol=2e-3, rtol=2e-3), "PerceiverResampler mismatch"

    # Standalone RMSNorm kernel: exercises the pad-free partial-last-block path
    # (rows=100, tile_rows=64 -> grid=2 with a masked partial block).
    xr = jax.random.normal(k_rms, (2, 50, 64), jnp.float32)
    gr = jnp.ones((64,), jnp.float32)
    yr = jax.block_until_ready(rmsnorm(xr, gr, max_tile_rows=64))
    assert jnp.allclose(yr, rmsnorm_reference(xr, gr), atol=1e-5, rtol=1e-5), "RMSNorm mismatch"

    print("KERNEL_OK")
</pallas_src>

<mosaic_0001>
module attributes {stable_mosaic.version = 11 : i64} {
  func.func @_layer_kernel(%arg0: i32, %arg1: memref<1x8x32xf32, #tpu.memory_space<vmem>>, %arg2: memref<1x8x32xf32, #tpu.memory_space<vmem>>, %arg3: memref<1x1x16xf32, #tpu.memory_space<vmem>>, %arg4: memref<32x64xf32, #tpu.memory_space<vmem>>, %arg5: memref<32x64xf32, #tpu.memory_space<vmem>>, %arg6: memref<32x64xf32, #tpu.memory_space<vmem>>, %arg7: memref<64x32xf32, #tpu.memory_space<vmem>>, %arg8: memref<32x85xf32, #tpu.memory_space<vmem>>, %arg9: memref<1x85xf32, #tpu.memory_space<vmem>>, %arg10: memref<32x85xf32, #tpu.memory_space<vmem>>, %arg11: memref<1x85xf32, #tpu.memory_space<vmem>>, %arg12: memref<85x32xf32, #tpu.memory_space<vmem>>, %arg13: memref<1x32xf32, #tpu.memory_space<vmem>>, %arg14: memref<1x32xf32, #tpu.memory_space<vmem>>, %arg15: memref<1x8x32xf32, #tpu.memory_space<vmem>>) attributes {dimension_semantics = [#tpu.dimension_semantics<parallel>], iteration_bounds = array<i64: 2>, scalar_prefetch = 0 : i64, scratch_operands = 0 : i64, tpu.core_type = #tpu.core_type<tc>, window_params = [{transform_indices = @transform_0, window_bounds = array<i64: 1, 8, 32>}, {transform_indices = @transform_1, window_bounds = array<i64: 1, 8, 32>}, {transform_indices = @transform_2, window_bounds = array<i64: 1, 1, 16>}, {pipeline_mode = #tpu.pipeline_mode<synchronous>, transform_indices = @transform_3, window_bounds = array<i64: 32, 64>}, {pipeline_mode = #tpu.pipeline_mode<synchronous>, transform_indices = @transform_4, window_bounds = array<i64: 32, 64>}, {pipeline_mode = #tpu.pipeline_mode<synchronous>, transform_indices = @transform_5, window_bounds = array<i64: 32, 64>}, {pipeline_mode = #tpu.pipeline_mode<synchronous>, transform_indices = @transform_6, window_bounds = array<i64: 64, 32>}, {pipeline_mode = #tpu.pipeline_mode<synchronous>, transform_indices = @transform_7, window_bounds = array<i64: 32, 85>}, {pipeline_mode = #tpu.pipeline_mode<synchronous>, transform_indices = @transform_8, window_bounds = array<i64: 1, 85>}, {pipeline_mode = #tpu.pipeline_mode<synchronous>, transform_indices = @transform_9, window_bounds = array<i64: 32, 85>}, {pipeline_mode = #tpu.pipeline_mode<synchronous>, transform_indices = @transform_10, window_bounds = array<i64: 1, 85>}, {pipeline_mode = #tpu.pipeline_mode<synchronous>, transform_indices = @transform_11, window_bounds = array<i64: 85, 32>}, {pipeline_mode = #tpu.pipeline_mode<synchronous>, transform_indices = @transform_12, window_bounds = array<i64: 1, 32>}, {pipeline_mode = #tpu.pipeline_mode<synchronous>, transform_indices = @transform_13, window_bounds = array<i64: 1, 32>}, {transform_indices = @transform_14, window_bounds = array<i64: 1, 8, 32>}]} {
    %c0 = arith.constant 0 : index
    %c0_0 = arith.constant 0 : index
    %c0_1 = arith.constant 0 : index
    %0 = vector.load %arg1[%c0, %c0_0, %c0_1] : memref<1x8x32xf32, #tpu.memory_space<vmem>>, vector<1x8x32xf32>
    %1 = vector.shape_cast %0 : vector<1x8x32xf32> to vector<8x32xf32>
    %c0_2 = arith.constant 0 : index
    %c0_3 = arith.constant 0 : index
    %c0_4 = arith.constant 0 : index
    %2 = vector.load %arg2[%c0_2, %c0_3, %c0_4] : memref<1x8x32xf32, #tpu.memory_space<vmem>>, vector<1x8x32xf32>
    %3 = vector.shape_cast %2 : vector<1x8x32xf32> to vector<8x32xf32>
    %c0_5 = arith.constant 0 : index
    %c0_6 = arith.constant 0 : index
    %c0_7 = arith.constant 0 : index
    %4 = vector.load %arg3[%c0_5, %c0_6, %c0_7] : memref<1x1x16xf32, #tpu.memory_space<vmem>>, vector<1x1x16xf32>
    %5 = vector.shape_cast %4 : vector<1x1x16xf32> to vector<1x16xf32>
    %6 = tpu.concatenate %1, %3 in 0 : vector<8x32xf32>, vector<8x32xf32> -> vector<16x32xf32>
    %c0_8 = arith.constant 0 : index
    %c0_9 = arith.constant 0 : index
    %7 = vector.load %arg4[%c0_8, %c0_9] : memref<32x64xf32, #tpu.memory_space<vmem>>, vector<32x64xf32>
    %cst = arith.constant dense<0.000000e+00> : vector<8x64xf32>
    %8 = tpu.matmul %1, %7, %cst {dimension_numbers = #tpu.dot_dimension_numbers<[1], [0], [0], [1], [0, 0, 1, 1], [], []>} : vector<8x32xf32>, vector<32x64xf32>, vector<8x64xf32> -> vector<8x64xf32>
    %cst_10 = arith.constant 2.500000e-01 : f32
    %9 = vector.broadcast %cst_10 : f32 to vector<8x64xf32>
    %10 = arith.mulf %8, %9 : vector<8x64xf32>
    %c0_11 = arith.constant 0 : index
    %c0_12 = arith.constant 0 : index
    %11 = vector.load %arg5[%c0_11, %c0_12] : memref<32x64xf32, #tpu.memory_space<vmem>>, vector<32x64xf32>
    %cst_13 = arith.constant dense<0.000000e+00> : vector<16x64xf32>
    %12 = tpu.matmul %6, %11, %cst_13 {dimension_numbers = #tpu.dot_dimension_numbers<[1], [0], [0], [1], [0, 0, 1, 1], [], []>} : vector<16x32xf32>, vector<32x64xf32>, vector<16x64xf32> -> vector<16x64xf32>
    %c0_14 = arith.constant 0 : index
    %c0_15 = arith.constant 0 : index
    %13 = vector.load %arg6[%c0_14, %c0_15] : memref<32x64xf32, #tpu.memory_space<vmem>>, vector<32x64xf32>
    %cst_16 = arith.constant dense<0.000000e+00> : vector<16x64xf32>
    %14 = tpu.matmul %6, %13, %cst_16 {dimension_numbers = #tpu.dot_dimension_numbers<[1], [0], [0], [1], [0, 0, 1, 1], [], []>} : vector<16x32xf32>, vector<32x64xf32>, vector<16x64xf32> -> vector<16x64xf32>
    %cst_17 = arith.constant 5.000000e-01 : f32
    %15 = vector.broadcast %cst_17 : f32 to vector<1x16xf32>
    %16 = arith.cmpf ogt, %5, %15 : vector<1x16xf32>
    %cst_18 = arith.constant 0.000000e+00 : f32
    %cst_19 = arith.constant -1.000000e+30 : f32
    %17 = vector.broadcast %cst_18 : f32 to vector<1x16xf32>
    %18 = vector.broadcast %cst_19 : f32 to vector<1x16xf32>
    %19 = arith.select %16, %17, %18 : vector<1x16xi1>, vector<1x16xf32>
    %20 = vector.extract_strided_slice %10 {offsets = [0, 0], sizes = [8, 16], strides = [1, 1]} : vector<8x64xf32> to vector<8x16xf32>
    %21 = vector.extract_strided_slice %12 {offsets = [0, 0], sizes = [16, 16], strides = [1, 1]} : vector<16x64xf32> to vector<16x16xf32>
    %22 = vector.extract_strided_slice %14 {offsets = [0, 0], sizes = [16, 16], strides = [1, 1]} : vector<16x64xf32> to vector<16x16xf32>
    %cst_20 = arith.constant dense<0.000000e+00> : vector<8x16xf32>
    %23 = tpu.matmul %20, %21, %cst_20 {dimension_numbers = #tpu.dot_dimension_numbers<[1], [1], [0], [0], [0, 0, 1, 0], [], []>} : vector<8x16xf32>, vector<16x16xf32>, vector<8x16xf32> -> vector<8x16xf32>
    %24 = vector.broadcast %19 : vector<1x16xf32> to vector<8x16xf32>
    %25 = arith.addf %23, %24 : vector<8x16xf32>
    %cst_21 = arith.constant dense<0xFF800000> : vector<8xf32>
    %26 = vector.multi_reduction <maximumf>, %25, %cst_21 [1] : vector<8x16xf32> to vector<8xf32>
    %27 = vector.shape_cast %26 : vector<8xf32> to vector<8x1xf32>
    %28 = vector.broadcast %27 : vector<8x1xf32> to vector<8x16xf32>
    %29 = arith.subf %25, %28 : vector<8x16xf32>
    %30 = math.exp %29 : vector<8x16xf32>
    %cst_22 = arith.constant dense<0.000000e+00> : vector<8xf32>
    %31 = vector.multi_reduction <add>, %30, %cst_22 [1] : vector<8x16xf32> to vector<8xf32>
    %32 = vector.shape_cast %31 : vector<8xf32> to vector<8x1xf32>
    %cst_23 = arith.constant dense<0.000000e+00> : vector<8x16xf32>
    %33 = tpu.matmul %30, %22, %cst_23 {dimension_numbers = #tpu.dot_dimension_numbers<[1], [0], [0], [1], [0, 0, 1, 1], [], []>} : vector<8x16xf32>, vector<16x16xf32>, vector<8x16xf32> -> vector<8x16xf32>
    %34 = vector.broadcast %32 : vector<8x1xf32> to vector<8x16xf32>
    %35 = arith.divf %33, %34 : vector<8x16xf32>
    %36 = vector.extract_strided_slice %10 {offsets = [0, 16], sizes = [8, 16], strides = [1, 1]} : vector<8x64xf32> to vector<8x16xf32>
    %37 = vector.extract_strided_slice %12 {offsets = [0, 16], sizes = [16, 16], strides = [1, 1]} : vector<16x64xf32> to vector<16x16xf32>
    %38 = vector.extract_strided_slice %14 {offsets = [0, 16], sizes = [16, 16], strides = [1, 1]} : vector<16x64xf32> to vector<16x16xf32>
    %cst_24 = arith.constant dense<0.000000e+00> : vector<8x16xf32>
    %39 = tpu.matmul %36, %37, %cst_24 {dimension_numbers = #tpu.dot_dimension_numbers<[1], [1], [0], [0], [0, 0, 1, 0], [], []>} : vector<8x16xf32>, vector<16x16xf32>, vector<8x16xf32> -> vector<8x16xf32>
    %40 = vector.broadcast %19 : vector<1x16xf32> to vector<8x16xf32>
    %41 = arith.addf %39, %40 : vector<8x16xf32>
    %cst_25 = arith.constant dense<0xFF800000> : vector<8xf32>
    %42 = vector.multi_reduction <maximumf>, %41, %cst_25 [1] : vector<8x16xf32> to vector<8xf32>
    %43 = vector.shape_cast %42 : vector<8xf32> to vector<8x1xf32>
    %44 = vector.broadcast %43 : vector<8x1xf32> to vector<8x16xf32>
    %45 = arith.subf %41, %44 : vector<8x16xf32>
    %46 = math.exp %45 : vector<8x16xf32>
    %cst_26 = arith.constant dense<0.000000e+00> : vector<8xf32>
    %47 = vector.multi_reduction <add>, %46, %cst_26 [1] : vector<8x16xf32> to vector<8xf32>
    %48 = vector.shape_cast %47 : vector<8xf32> to vector<8x1xf32>
    %cst_27 = arith.constant dense<0.000000e+00> : vector<8x16xf32>
    %49 = tpu.matmul %46, %38, %cst_27 {dimension_numbers = #tpu.dot_dimension_numbers<[1], [0], [0], [1], [0, 0, 1, 1], [], []>} : vector<8x16xf32>, vector<16x16xf32>, vector<8x16xf32> -> vector<8x16xf32>
    %50 = vector.broadcast %48 : vector<8x1xf32> to vector<8x16xf32>
    %51 = arith.divf %49, %50 : vector<8x16xf32>
    %52 = vector.extract_strided_slice %10 {offsets = [0, 32], sizes = [8, 16], strides = [1, 1]} : vector<8x64xf32> to vector<8x16xf32>
    %53 = vector.extract_strided_slice %12 {offsets = [0, 32], sizes = [16, 16], strides = [1, 1]} : vector<16x64xf32> to vector<16x16xf32>
    %54 = vector.extract_strided_slice %14 {offsets = [0, 32], sizes = [16, 16], strides = [1, 1]} : vector<16x64xf32> to vector<16x16xf32>
    %cst_28 = arith.constant dense<0.000000e+00> : vector<8x16xf32>
    %55 = tpu.matmul %52, %53, %cst_28 {dimension_numbers = #tpu.dot_dimension_numbers<[1], [1], [0], [0], [0, 0, 1, 0], [], []>} : vector<8x16xf32>, vector<16x16xf32>, vector<8x16xf32> -> vector<8x16xf32>
    %56 = vector.broadcast %19 : vector<1x16xf32> to vector<8x16xf32>
    %57 = arith.addf %55, %56 : vector<8x16xf32>
    %cst_29 = arith.constant dense<0xFF800000> : vector<8xf32>
    %58 = vector.multi_reduction <maximumf>, %57, %cst_29 [1] : vector<8x16xf32> to vector<8xf32>
    %59 = vector.shape_cast %58 : vector<8xf32> to vector<8x1xf32>
    %60 = vector.broadcast %59 : vector<8x1xf32> to vector<8x16xf32>
    %61 = arith.subf %57, %60 : vector<8x16xf32>
    %62 = math.exp %61 : vector<8x16xf32>
    %cst_30 = arith.constant dense<0.000000e+00> : vector<8xf32>
    %63 = vector.multi_reduction <add>, %62, %cst_30 [1] : vector<8x16xf32> to vector<8xf32>
    %64 = vector.shape_cast %63 : vector<8xf32> to vector<8x1xf32>
    %cst_31 = arith.constant dense<0.000000e+00> : vector<8x16xf32>
    %65 = tpu.matmul %62, %54, %cst_31 {dimension_numbers = #tpu.dot_dimension_numbers<[1], [0], [0], [1], [0, 0, 1, 1], [], []>} : vector<8x16xf32>, vector<16x16xf32>, vector<8x16xf32> -> vector<8x16xf32>
    %66 = vector.broadcast %64 : vector<8x1xf32> to vector<8x16xf32>
    %67 = arith.divf %65, %66 : vector<8x16xf32>
    %68 = vector.extract_strided_slice %10 {offsets = [0, 48], sizes = [8, 16], strides = [1, 1]} : vector<8x64xf32> to vector<8x16xf32>
    %69 = vector.extract_strided_slice %12 {offsets = [0, 48], sizes = [16, 16], strides = [1, 1]} : vector<16x64xf32> to vector<16x16xf32>
    %70 = vector.extract_strided_slice %14 {offsets = [0, 48], sizes = [16, 16], strides = [1, 1]} : vector<16x64xf32> to vector<16x16xf32>
    %cst_32 = arith.constant dense<0.000000e+00> : vector<8x16xf32>
    %71 = tpu.matmul %68, %69, %cst_32 {dimension_numbers = #tpu.dot_dimension_numbers<[1], [1], [0], [0], [0, 0, 1, 0], [], []>} : vector<8x16xf32>, vector<16x16xf32>, vector<8x16xf32> -> vector<8x16xf32>
    %72 = vector.broadcast %19 : vector<1x16xf32> to vector<8x16xf32>
    %73 = arith.addf %71, %72 : vector<8x16xf32>
    %cst_33 = arith.constant dense<0xFF800000> : vector<8xf32>
    %74 = vector.multi_reduction <maximumf>, %73, %cst_33 [1] : vector<8x16xf32> to vector<8xf32>
    %75 = vector.shape_cast %74 : vector<8xf32> to vector<8x1xf32>
    %76 = vector.broadcast %75 : vector<8x1xf32> to vector<8x16xf32>
    %77 = arith.subf %73, %76 : vector<8x16xf32>
    %78 = math.exp %77 : vector<8x16xf32>
    %cst_34 = arith.constant dense<0.000000e+00> : vector<8xf32>
    %79 = vector.multi_reduction <add>, %78, %cst_34 [1] : vector<8x16xf32> to vector<8xf32>
    %80 = vector.shape_cast %79 : vector<8xf32> to vector<8x1xf32>
    %cst_35 = arith.constant dense<0.000000e+00> : vector<8x16xf32>
    %81 = tpu.matmul %78, %70, %cst_35 {dimension_numbers = #tpu.dot_dimension_numbers<[1], [0], [0], [1], [0, 0, 1, 1], [], []>} : vector<8x16xf32>, vector<16x16xf32>, vector<8x16xf32> -> vector<8x16xf32>
    %82 = vector.broadcast %80 : vector<8x1xf32> to vector<8x16xf32>
    %83 = arith.divf %81, %82 : vector<8x16xf32>
    %84 = tpu.concatenate %35, %51, %67, %83 in 1 : vector<8x16xf32>, vector<8x16xf32>, vector<8x16xf32>, vector<8x16xf32> -> vector<8x64xf32>
    %c0_36 = arith.constant 0 : index
    %c0_37 = arith.constant 0 : index
    %85 = vector.load %arg7[%c0_36, %c0_37] : memref<64x32xf32, #tpu.memory_space<vmem>>, vector<64x32xf32>
    %cst_38 = arith.constant dense<0.000000e+00> : vector<8x32xf32>
    %86 = tpu.matmul %84, %85, %cst_38 {dimension_numbers = #tpu.dot_dimension_numbers<[1], [0], [0], [1], [0, 0, 1, 1], [], []>} : vector<8x64xf32>, vector<64x32xf32>, vector<8x32xf32> -> vector<8x32xf32>
    %87 = arith.addf %86, %1 : vector<8x32xf32>
    %c0_39 = arith.constant 0 : index
    %c0_40 = arith.constant 0 : index
    %88 = vector.load %arg8[%c0_39, %c0_40] : memref<32x85xf32, #tpu.memory_space<vmem>>, vector<32x85xf32>
    %cst_41 = arith.constant dense<0.000000e+00> : vector<8x85xf32>
    %89 = tpu.matmul %87, %88, %cst_41 {dimension_numbers = #tpu.dot_dimension_numbers<[1], [0], [0], [1], [0, 0, 1, 1], [], []>} : vector<8x32xf32>, vector<32x85xf32>, vector<8x85xf32> -> vector<8x85xf32>
    %c0_42 = arith.constant 0 : index
    %c0_43 = arith.constant 0 : index
    %90 = vector.load %arg9[%c0_42, %c0_43] : memref<1x85xf32, #tpu.memory_space<vmem>>, vector<1x85xf32>
    %91 = vector.broadcast %90 : vector<1x85xf32> to vector<8x85xf32>
    %92 = arith.addf %89, %91 : vector<8x85xf32>
    %c0_44 = arith.constant 0 : index
    %c0_45 = arith.constant 0 : index
    %93 = vector.load %arg10[%c0_44, %c0_45] : memref<32x85xf32, #tpu.memory_space<vmem>>, vector<32x85xf32>
    %cst_46 = arith.constant dense<0.000000e+00> : vector<8x85xf32>
    %94 = tpu.matmul %87, %93, %cst_46 {dimension_numbers = #tpu.dot_dimension_numbers<[1], [0], [0], [1], [0, 0, 1, 1], [], []>} : vector<8x32xf32>, vector<32x85xf32>, vector<8x85xf32> -> vector<8x85xf32>
    %c0_47 = arith.constant 0 : index
    %c0_48 = arith.constant 0 : index
    %95 = vector.load %arg11[%c0_47, %c0_48] : memref<1x85xf32, #tpu.memory_space<vmem>>, vector<1x85xf32>
    %96 = vector.broadcast %95 : vector<1x85xf32> to vector<8x85xf32>
    %97 = arith.addf %94, %96 : vector<8x85xf32>
    %cst_49 = arith.constant 5.000000e-01 : f32
    %98 = vector.broadcast %cst_49 : f32 to vector<8x85xf32>
    %99 = arith.mulf %98, %97 : vector<8x85xf32>
    %cst_50 = arith.constant 0.707106769 : f32
    %100 = vector.broadcast %cst_50 : f32 to vector<8x85xf32>
    %101 = arith.mulf %97, %100 : vector<8x85xf32>
    %102 = math.absf %101 : vector<8x85xf32>
    %cst_51 = arith.constant 0.327591091 : f32
    %103 = vector.broadcast %cst_51 : f32 to vector<8x85xf32>
    %104 = arith.mulf %103, %102 : vector<8x85xf32>
    %cst_52 = arith.constant 1.000000e+00 : f32
    %105 = vector.broadcast %cst_52 : f32 to vector<8x85xf32>
    %106 = arith.addf %105, %104 : vector<8x85xf32>
    %cst_53 = arith.constant 1.000000e+00 : f32
    %107 = vector.broadcast %cst_53 : f32 to vector<8x85xf32>
    %108 = arith.divf %107, %106 : vector<8x85xf32>
    %cst_54 = arith.constant 1.06140542 : f32
    %109 = vector.broadcast %cst_54 : f32 to vector<8x85xf32>
    %110 = arith.mulf %109, %108 : vector<8x85xf32>
    %cst_55 = arith.constant -1.45315206 : f32
    %111 = vector.broadcast %cst_55 : f32 to vector<8x85xf32>
    %112 = arith.addf %110, %111 : vector<8x85xf32>
    %113 = arith.mulf %112, %108 : vector<8x85xf32>
    %cst_56 = arith.constant 1.42141378 : f32
    %114 = vector.broadcast %cst_56 : f32 to vector<8x85xf32>
    %115 = arith.addf %113, %114 : vector<8x85xf32>
    %116 = arith.mulf %115, %108 : vector<8x85xf32>
    %cst_57 = arith.constant -0.284496725 : f32
    %117 = vector.broadcast %cst_57 : f32 to vector<8x85xf32>
    %118 = arith.addf %116, %117 : vector<8x85xf32>
    %119 = arith.mulf %118, %108 : vector<8x85xf32>
    %cst_58 = arith.constant 0.254829586 : f32
    %120 = vector.broadcast %cst_58 : f32 to vector<8x85xf32>
    %121 = arith.addf %119, %120 : vector<8x85xf32>
    %122 = arith.mulf %121, %108 : vector<8x85xf32>
    %cst_59 = arith.constant 0.000000e+00 : f32
    %123 = vector.broadcast %cst_59 : f32 to vector<8x85xf32>
    %124 = arith.subf %123, %102 : vector<8x85xf32>
    %125 = arith.mulf %124, %102 : vector<8x85xf32>
    %126 = math.exp %125 : vector<8x85xf32>
    %127 = arith.mulf %122, %126 : vector<8x85xf32>
    %cst_60 = arith.constant 1.000000e+00 : f32
    %128 = vector.broadcast %cst_60 : f32 to vector<8x85xf32>
    %129 = arith.subf %128, %127 : vector<8x85xf32>
    %cst_61 = arith.constant 0.000000e+00 : f32
    %130 = vector.broadcast %cst_61 : f32 to vector<8x85xf32>
    %131 = arith.cmpf oge, %101, %130 : vector<8x85xf32>
    %cst_62 = arith.constant 0.000000e+00 : f32
    %132 = vector.broadcast %cst_62 : f32 to vector<8x85xf32>
    %133 = arith.subf %132, %129 : vector<8x85xf32>
    %134 = arith.select %131, %129, %133 : vector<8x85xi1>, vector<8x85xf32>
    %cst_63 = arith.constant 1.000000e+00 : f32
    %135 = vector.broadcast %cst_63 : f32 to vector<8x85xf32>
    %136 = arith.addf %135, %134 : vector<8x85xf32>
    %137 = arith.mulf %99, %136 : vector<8x85xf32>
    %138 = arith.mulf %137, %92 : vector<8x85xf32>
    %c0_64 = arith.constant 0 : index
    %c0_65 = arith.constant 0 : index
    %139 = vector.load %arg12[%c0_64, %c0_65] : memref<85x32xf32, #tpu.memory_space<vmem>>, vector<85x32xf32>
    %cst_66 = arith.constant dense<0.000000e+00> : vector<8x32xf32>
    %140 = tpu.matmul %138, %139, %cst_66 {dimension_numbers = #tpu.dot_dimension_numbers<[1], [0], [0], [1], [0, 0, 1, 1], [], []>} : vector<8x85xf32>, vector<85x32xf32>, vector<8x32xf32> -> vector<8x32xf32>
    %c0_67 = arith.constant 0 : index
    %c0_68 = arith.constant 0 : index
    %141 = vector.load %arg13[%c0_67, %c0_68] : memref<1x32xf32, #tpu.memory_space<vmem>>, vector<1x32xf32>
    %142 = vector.broadcast %141 : vector<1x32xf32> to vector<8x32xf32>
    %143 = arith.addf %140, %142 : vector<8x32xf32>
    %144 = arith.addf %143, %87 : vector<8x32xf32>
    %c0_69 = arith.constant 0 : index
    %c0_70 = arith.constant 0 : index
    %c0_71 = arith.constant 0 : index
    %145 = vector.load %arg15[%c0_69, %c0_70, %c0_71] : memref<1x8x32xf32, #tpu.memory_space<vmem>>, vector<1x8x32xf32>
    %146 = vector.shape_cast %145 : vector<1x8x32xf32> to vector<8x32xf32>
    %147 = vector.shape_cast %144 : vector<8x32xf32> to vector<1x8x32xf32>
    tpu.vector_store %arg15[%c0_69, %c0_70, %c0_71], %147 {strides = array<i32>} : memref<1x8x32xf32, #tpu.memory_space<vmem>>, vector<1x8x32xf32>,
    return
  }
  func.func @transform_0(%arg0: i32) -> (i32, i32, i32) {
    %c0_i32 = arith.constant 0 : i32
    %c0_i32_0 = arith.constant 0 : i32
    %c0_i32_1 = arith.constant 0 : i32
    return %arg0, %c0_i32, %c0_i32_0 : i32, i32, i32
  }
  func.func @transform_1(%arg0: i32) -> (i32, i32, i32) {
    %c0_i32 = arith.constant 0 : i32
    %c0_i32_0 = arith.constant 0 : i32
    %c0_i32_1 = arith.constant 0 : i32
    return %arg0, %c0_i32, %c0_i32_0 : i32, i32, i32
  }
  func.func @transform_2(%arg0: i32) -> (i32, i32, i32) {
    %c0_i32 = arith.constant 0 : i32
    %c0_i32_0 = arith.constant 0 : i32
    %c0_i32_1 = arith.constant 0 : i32
    return %arg0, %c0_i32, %c0_i32_0 : i32, i32, i32
  }
  func.func @transform_3(%arg0: i32) -> (i32, i32) {
    %c0_i32 = arith.constant 0 : i32
    %c0_i32_0 = arith.constant 0 : i32
    %c0_i32_1 = arith.constant 0 : i32
    return %c0_i32, %c0_i32_0 : i32, i32
  }
  func.func @transform_4(%arg0: i32) -> (i32, i32) {
    %c0_i32 = arith.constant 0 : i32
    %c0_i32_0 = arith.constant 0 : i32
    %c0_i32_1 = arith.constant 0 : i32
    return %c0_i32, %c0_i32_0 : i32, i32
  }
  func.func @transform_5(%arg0: i32) -> (i32, i32) {
    %c0_i32 = arith.constant 0 : i32
    %c0_i32_0 = arith.constant 0 : i32
    %c0_i32_1 = arith.constant 0 : i32
    return %c0_i32, %c0_i32_0 : i32, i32
  }
  func.func @transform_6(%arg0: i32) -> (i32, i32) {
    %c0_i32 = arith.constant 0 : i32
    %c0_i32_0 = arith.constant 0 : i32
    %c0_i32_1 = arith.constant 0 : i32
    return %c0_i32, %c0_i32_0 : i32, i32
  }
  func.func @transform_7(%arg0: i32) -> (i32, i32) {
    %c0_i32 = arith.constant 0 : i32
    %c0_i32_0 = arith.constant 0 : i32
    %c0_i32_1 = arith.constant 0 : i32
    return %c0_i32, %c0_i32_0 : i32, i32
  }
  func.func @transform_8(%arg0: i32) -> (i32, i32) {
    %c0_i32 = arith.constant 0 : i32
    %c0_i32_0 = arith.constant 0 : i32
    %c0_i32_1 = arith.constant 0 : i32
    return %c0_i32, %c0_i32_0 : i32, i32
  }
  func.func @transform_9(%arg0: i32) -> (i32, i32) {
    %c0_i32 = arith.constant 0 : i32
    %c0_i32_0 = arith.constant 0 : i32
    %c0_i32_1 = arith.constant 0 : i32
    return %c0_i32, %c0_i32_0 : i32, i32
  }
  func.func @transform_10(%arg0: i32) -> (i32, i32) {
    %c0_i32 = arith.constant 0 : i32
    %c0_i32_0 = arith.constant 0 : i32
    %c0_i32_1 = arith.constant 0 : i32
    return %c0_i32, %c0_i32_0 : i32, i32
  }
  func.func @transform_11(%arg0: i32) -> (i32, i32) {
    %c0_i32 = arith.constant 0 : i32
    %c0_i32_0 = arith.constant 0 : i32
    %c0_i32_1 = arith.constant 0 : i32
    return %c0_i32, %c0_i32_0 : i32, i32
  }
  func.func @transform_12(%arg0: i32) -> (i32, i32) {
    %c0_i32 = arith.constant 0 : i32
    %c0_i32_0 = arith.constant 0 : i32
    %c0_i32_1 = arith.constant 0 : i32
    return %c0_i32, %c0_i32_0 : i32, i32
  }
  func.func @transform_13(%arg0: i32) -> (i32, i32) {
    %c0_i32 = arith.constant 0 : i32
    %c0_i32_0 = arith.constant 0 : i32
    %c0_i32_1 = arith.constant 0 : i32
    return %c0_i32, %c0_i32_0 : i32, i32
  }
  func.func @transform_14(%arg0: i32) -> (i32, i32, i32) {
    %c0_i32 = arith.constant 0 : i32
    %c0_i32_0 = arith.constant 0 : i32
    %c0_i32_1 = arith.constant 0 : i32
    return %arg0, %c0_i32, %c0_i32_0 : i32, i32, i32
  }
}

</mosaic_0001>

<llo_original>
// kernel: tpu_custom_call.1
$region0: #{tpu_custom_call.1}
  #allocation0 [shape = 'u32[]', space=smem, size = 0x4, offset = 0x4, fixed_abs, tag = 'smem constant byte address 0x4 - core index']
  #allocation1 [shape = 'u32[144,128]{1,0:T(1,128)}', space=vmem, size = 0x12000, scoped, tag = 'internal scratch']
  %s0 = inlined_call_operand.vmem [shape: f32[2,8,32], index: 0, kind: input, shape index: {}]
  %s1 = inlined_call_operand.hbm [shape: f32[2,8,32], index: 1, kind: input, shape index: {}]
  %s2 = inlined_call_operand.vmem [shape: f32[2,1,16], index: 2, kind: input, shape index: {}]
  %s3 = inlined_call_operand.vmem [shape: f32[32,64], index: 3, kind: input, shape index: {}]
  %s4 = inlined_call_operand.vmem [shape: f32[32,64], index: 4, kind: input, shape index: {}]
  %s5 = inlined_call_operand.vmem [shape: f32[32,64], index: 5, kind: input, shape index: {}]
  %s6 = inlined_call_operand.vmem [shape: f32[64,32], index: 6, kind: input, shape index: {}]
  %s7 = inlined_call_operand.vmem [shape: f32[32,85], index: 7, kind: input, shape index: {}]
  %s8 = inlined_call_operand.vmem [shape: f32[1,85], index: 8, kind: input, shape index: {}]
  %s9 = inlined_call_operand.vmem [shape: f32[32,85], index: 9, kind: input, shape index: {}]
  %s10 = inlined_call_operand.vmem [shape: f32[1,85], index: 10, kind: input, shape index: {}]
  %s11 = inlined_call_operand.vmem [shape: f32[85,32], index: 11, kind: input, shape index: {}]
  %s12 = inlined_call_operand.vmem [shape: f32[1,32], index: 12, kind: input, shape index: {}]
  %s13 = inlined_call_operand.vmem [shape: f32[1,32], index: 13, kind: input, shape index: {}]
  %s14 = inlined_call_operand.hbm [shape: f32[2,8,32], index: 14, kind: output, shape index: {}]
  %s15 = sld [smem:[#allocation0]]
  $region93: #{tpu_custom_call.1} parent=0
    _
  %s17 = ssub.s32 1, %s15
  %s18 = scalar_select 0, %s17, %s15
  $region1: #{tpu_custom_call.1} parent=0
    #allocation2 [shape = 'u8[8192]{0}', space=vmem, size = 0x2000, scoped, tag = 'input window, operand 1']
    #allocation3 [shape = 's32[2]{0}', space=sflag, size = 0x8, scoped, tag = 'scoped memory for tpu_custom_call.1']
    #allocation4 [shape = 's32[2]{0}', space=sflag, size = 0x8, scoped, tag = 'scoped memory for tpu_custom_call.1']
    #allocation5 [shape = 'u8[8192]{0}', space=vmem, size = 0x2000, scoped, tag = 'output window, operand 0']
    %19 = vsyncpa [#allocation3], 0
    %s20 = scalar_lea.sflag [#allocation3], 1
    %21 = vsyncpa %s20, 0
    %22 = vsyncpa [#allocation4], 0
    %s23 = scalar_lea.sflag [#allocation4], 1
    %24 = vsyncpa %s23, 0
    loop: start=0, step=1, limit=4
    $region2: #{tpu_custom_call.1} parent=1 // loop_pre_header
      _
    $region3: #{tpu_custom_call.1} parent=1 // loop_header
      %s26 = sphi 0, %s30
      %p27 = scmp.ge.s32.totalorder %s26, 4
      %s36 = sphi 0, %s38
      %s39 = sphi 0, %s36
      %s40 = sphi 0, %s39
      %s56 = sphi 0, %s40
      %s62 = sphi 0, %s64
      %s65 = sphi 0, %s62
      %s66 = sphi 0, %s65
      %s82 = sphi 0, %s66
      %s88 = sphi 0, %s90
      %s91 = sphi 0, %s88
      %s92 = sphi 0, %s91
      %s108 = sphi 0, %s92
      %s112 = sphi 0, %s112
      %s114 = sphi 0, %s112
      %s115 = sphi 0, %s114
      %s129 = sphi 0, %s115
      %s133 = sphi 0, %s133
      %s135 = sphi 0, %s133
      %s136 = sphi 0, %s135
      %s150 = sphi 0, %s136
      %s154 = sphi 0, %s154
      %s156 = sphi 0, %s154
      %s157 = sphi 0, %s156
      %s171 = sphi 0, %s157
      %s175 = sphi 0, %s175
      %s177 = sphi 0, %s175
      %s178 = sphi 0, %s177
      %s192 = sphi 0, %s178
      %s196 = sphi 0, %s196
      %s198 = sphi 0, %s196
      %s199 = sphi 0, %s198
      %s213 = sphi 0, %s199
      %s217 = sphi 0, %s217
      %s219 = sphi 0, %s217
      %s220 = sphi 0, %s219
      %s234 = sphi 0, %s220
      %s238 = sphi 0, %s238
      %s240 = sphi 0, %s238
      %s241 = sphi 0, %s240
      %s255 = sphi 0, %s241
      %s259 = sphi 0, %s259
      %s261 = sphi 0, %s259
      %s262 = sphi 0, %s261
      %s276 = sphi 0, %s262
      %s280 = sphi 0, %s280
      %s282 = sphi 0, %s280
      %s283 = sphi 0, %s282
      %s297 = sphi 0, %s283
      %s301 = sphi 0, %s301
      %s303 = sphi 0, %s301
      %s304 = sphi 0, %s303
      %s318 = sphi 0, %s304
      %s322 = sphi 0, %s322
      %s324 = sphi 0, %s322
      %s325 = sphi 0, %s324
      %s339 = sphi 0, %s325
      %s345 = sphi 0, %s347
      %s348 = sphi 0, %s345
      %s349 = sphi 0, %s348
      %s365 = sphi 0, %s349
    $region4: #{tpu_custom_call.1} parent=1 // loop_header_branch
      %29 = sbr.rel (%p27) target = $region8
    $region5: #{tpu_custom_call.1} parent=1 // loop_body
      %s31 = ssub.s32 %s26, 1
      %s32 = ssub.s32 %s26, 2
      %s33 = sadd.s32 %s26, 1
      %s34 = ssub.s32 %s26, %s33
      %p35 = scmp.eq.s32.totalorder %s34, 0
      %s37 = sadd.s32 %s36, 1
      %s38 = scalar_select %p35, %s36, %s37
      %p41 = pneg %p35
      %p42 = scmp.eq.s32.totalorder %s26, 1
      %p43 = por %p41, %p42
      %p44 = scmp.ne.s32.totalorder %s36, %s39
      %p45 = scmp.eq.s32.totalorder %s26, 0
      %p46 = por %p44, %p45
      %p47 = scmp.ne.s32.totalorder %s36, %s39
      %p48 = scmp.eq.s32.totalorder %s31, 1
      %p49 = por %p47, %p48
      %p50 = scmp.ne.s32.totalorder %s39, %s40
      %p51 = scmp.eq.s32.totalorder %s31, 0
      %p52 = por %p50, %p51
      %p53 = scmp.ne.s32.totalorder %s39, %s40
      %p54 = scmp.eq.s32.totalorder %s32, 1
      %p55 = por %p53, %p54
      %p57 = scmp.ne.s32.totalorder %s40, %s56
      %p58 = scmp.eq.s32.totalorder %s32, 0
      %p59 = por %p57, %p58
      %s60 = ssub.s32 %s26, %s33
      %p61 = scmp.eq.s32.totalorder %s60, 0
      %s63 = sadd.s32 %s62, 1
      %s64 = scalar_select %p61, %s62, %s63
      %p67 = pneg %p61
      %p68 = scmp.eq.s32.totalorder %s26, 1
      %p69 = por %p67, %p68
      %p70 = scmp.ne.s32.totalorder %s62, %s65
      %p71 = scmp.eq.s32.totalorder %s26, 0
      %p72 = por %p70, %p71
      %p73 = scmp.ne.s32.totalorder %s62, %s65
      %p74 = scmp.eq.s32.totalorder %s31, 1
      %p75 = por %p73, %p74
      %p76 = scmp.ne.s32.totalorder %s65, %s66
      %p77 = scmp.eq.s32.totalorder %s31, 0
      %p78 = por %p76, %p77
      %p79 = scmp.ne.s32.totalorder %s65, %s66
      %p80 = scmp.eq.s32.totalorder %s32, 1
      %p81 = por %p79, %p80
      %p83 = scmp.ne.s32.totalorder %s66, %s82
      %p84 = scmp.eq.s32.totalorder %s32, 0
      %p85 = por %p83, %p84
      %s86 = ssub.s32 %s26, %s33
      %p87 = scmp.eq.s32.totalorder %s86, 0
      %s89 = sadd.s32 %s88, 1
      %s90 = scalar_select %p87, %s88, %s89
      %p93 = pneg %p87
      %p94 = scmp.eq.s32.totalorder %s26, 1
      %p95 = por %p93, %p94
      %p96 = scmp.ne.s32.totalorder %s88, %s91
      %p97 = scmp.eq.s32.totalorder %s26, 0
      %p98 = por %p96, %p97
      %p99 = scmp.ne.s32.totalorder %s88, %s91
      %p100 = scmp.eq.s32.totalorder %s31, 1
      %p101 = por %p99, %p100
      %p102 = scmp.ne.s32.totalorder %s91, %s92
      %p103 = scmp.eq.s32.totalorder %s31, 0
      %p104 = por %p102, %p103
      %p105 = scmp.ne.s32.totalorder %s91, %s92
      %p106 = scmp.eq.s32.totalorder %s32, 1
      %p107 = por %p105, %p106
      %p109 = scmp.ne.s32.totalorder %s92, %s108
      %p110 = scmp.eq.s32.totalorder %s32, 0
      %p111 = por %p109, %p110
      %s113 = sadd.s32 %s112, 1
      %p116 = scmp.eq.s32.totalorder %s26, 1
      %p117 = scmp.ne.s32.totalorder %s112, %s114
      %p118 = scmp.eq.s32.totalorder %s26, 0
      %p119 = por %p117, %p118
      %p120 = scmp.ne.s32.totalorder %s112, %s114
      %p121 = scmp.eq.s32.totalorder %s31, 1
      %p122 = por %p120, %p121
      %p123 = scmp.ne.s32.totalorder %s114, %s115
      %p124 = scmp.eq.s32.totalorder %s31, 0
      %p125 = por %p123, %p124
      %p126 = scmp.ne.s32.totalorder %s114, %s115
      %p127 = scmp.eq.s32.totalorder %s32, 1
      %p128 = por %p126, %p127
      %p130 = scmp.ne.s32.totalorder %s115, %s129
      %p131 = scmp.eq.s32.totalorder %s32, 0
      %p132 = por %p130, %p131
      %s134 = sadd.s32 %s133, 1
      %p137 = scmp.eq.s32.totalorder %s26, 1
      %p138 = scmp.ne.s32.totalorder %s133, %s135
      %p139 = scmp.eq.s32.totalorder %s26, 0
      %p140 = por %p138, %p139
      %p141 = scmp.ne.s32.totalorder %s133, %s135
      %p142 = scmp.eq.s32.totalorder %s31, 1
      %p143 = por %p141, %p142
      %p144 = scmp.ne.s32.totalorder %s135, %s136
      %p145 = scmp.eq.s32.totalorder %s31, 0
      %p146 = por %p144, %p145
      %p147 = scmp.ne.s32.totalorder %s135, %s136
      %p148 = scmp.eq.s32.totalorder %s32, 1
      %p149 = por %p147, %p148
      %p151 = scmp.ne.s32.totalorder %s136, %s150
      %p152 = scmp.eq.s32.totalorder %s32, 0
      %p153 = por %p151, %p152
      %s155 = sadd.s32 %s154, 1
      %p158 = scmp.eq.s32.totalorder %s26, 1
      %p159 = scmp.ne.s32.totalorder %s154, %s156
      %p160 = scmp.eq.s32.totalorder %s26, 0
      %p161 = por %p159, %p160
      %p162 = scmp.ne.s32.totalorder %s154, %s156
      %p163 = scmp.eq.s32.totalorder %s31, 1
      %p164 = por %p162, %p163
      %p165 = scmp.ne.s32.totalorder %s156, %s157
      %p166 = scmp.eq.s32.totalorder %s31, 0
      %p167 = por %p165, %p166
      %p168 = scmp.ne.s32.totalorder %s156, %s157
      %p169 = scmp.eq.s32.totalorder %s32, 1
      %p170 = por %p168, %p169
      %p172 = scmp.ne.s32.totalorder %s157, %s171
      %p173 = scmp.eq.s32.totalorder %s32, 0
      %p174 = por %p172, %p173
      %s176 = sadd.s32 %s175, 1
      %p179 = scmp.eq.s32.totalorder %s26, 1
      %p180 = scmp.ne.s32.totalorder %s175, %s177
      %p181 = scmp.eq.s32.totalorder %s26, 0
      %p182 = por %p180, %p181
      %p183 = scmp.ne.s32.totalorder %s175, %s177
      %p184 = scmp.eq.s32.totalorder %s31, 1
      %p185 = por %p183, %p184
      %p186 = scmp.ne.s32.totalorder %s177, %s178
      %p187 = scmp.eq.s32.totalorder %s31, 0
      %p188 = por %p186, %p187
      %p189 = scmp.ne.s32.totalorder %s177, %s178
      %p190 = scmp.eq.s32.totalorder %s32, 1
      %p191 = por %p189, %p190
      %p193 = scmp.ne.s32.totalorder %s178, %s192
      %p194 = scmp.eq.s32.totalorder %s32, 0
      %p195 = por %p193, %p194
      %s197 = sadd.s32 %s196, 1
      %p200 = scmp.eq.s32.totalorder %s26, 1
      %p201 = scmp.ne.s32.totalorder %s196, %s198
      %p202 = scmp.eq.s32.totalorder %s26, 0
      %p203 = por %p201, %p202
      %p204 = scmp.ne.s32.totalorder %s196, %s198
      %p205 = scmp.eq.s32.totalorder %s31, 1
      %p206 = por %p204, %p205
      %p207 = scmp.ne.s32.totalorder %s198, %s199
      %p208 = scmp.eq.s32.totalorder %s31, 0
      %p209 = por %p207, %p208
      %p210 = scmp.ne.s32.totalorder %s198, %s199
      %p211 = scmp.eq.s32.totalorder %s32, 1
      %p212 = por %p210, %p211
      %p214 = scmp.ne.s32.totalorder %s199, %s213
      %p215 = scmp.eq.s32.totalorder %s32, 0
      %p216 = por %p214, %p215
      %s218 = sadd.s32 %s217, 1
      %p221 = scmp.eq.s32.totalorder %s26, 1
      %p222 = scmp.ne.s32.totalorder %s217, %s219
      %p223 = scmp.eq.s32.totalorder %s26, 0
      %p224 = por %p222, %p223
      %p225 = scmp.ne.s32.totalorder %s217, %s219
      %p226 = scmp.eq.s32.totalorder %s31, 1
      %p227 = por %p225, %p226
      %p228 = scmp.ne.s32.totalorder %s219, %s220
      %p229 = scmp.eq.s32.totalorder %s31, 0
      %p230 = por %p228, %p229
      %p231 = scmp.ne.s32.totalorder %s219, %s220
      %p232 = scmp.eq.s32.totalorder %s32, 1
      %p233 = por %p231, %p232
      %p235 = scmp.ne.s32.totalorder %s220, %s234
      %p236 = scmp.eq.s32.totalorder %s32, 0
      %p237 = por %p235, %p236
      %s239 = sadd.s32 %s238, 1
      %p242 = scmp.eq.s32.totalorder %s26, 1
      %p243 = scmp.ne.s32.totalorder %s238, %s240
      %p244 = scmp.eq.s32.totalorder %s26, 0
      %p245 = por %p243, %p244
      %p246 = scmp.ne.s32.totalorder %s238, %s240
      %p247 = scmp.eq.s32.totalorder %s31, 1
      %p248 = por %p246, %p247
      %p249 = scmp.ne.s32.totalorder %s240, %s241
      %p250 = scmp.eq.s32.totalorder %s31, 0
      %p251 = por %p249, %p250
      %p252 = scmp.ne.s32.totalorder %s240, %s241
      %p253 = scmp.eq.s32.totalorder %s32, 1
      %p254 = por %p252, %p253
      %p256 = scmp.ne.s32.totalorder %s241, %s255
      %p257 = scmp.eq.s32.totalorder %s32, 0
      %p258 = por %p256, %p257
      %s260 = sadd.s32 %s259, 1
      %p263 = scmp.eq.s32.totalorder %s26, 1
      %p264 = scmp.ne.s32.totalorder %s259, %s261
      %p265 = scmp.eq.s32.totalorder %s26, 0
      %p266 = por %p264, %p265
      %p267 = scmp.ne.s32.totalorder %s259, %s261
      %p268 = scmp.eq.s32.totalorder %s31, 1
      %p269 = por %p267, %p268
      %p270 = scmp.ne.s32.totalorder %s261, %s262
      %p271 = scmp.eq.s32.totalorder %s31, 0
      %p272 = por %p270, %p271
      %p273 = scmp.ne.s32.totalorder %s261, %s262
      %p274 = scmp.eq.s32.totalorder %s32, 1
      %p275 = por %p273, %p274
      %p277 = scmp.ne.s32.totalorder %s262, %s276
      %p278 = scmp.eq.s32.totalorder %s32, 0
      %p279 = por %p277, %p278
      %s281 = sadd.s32 %s280, 1
      %p284 = scmp.eq.s32.totalorder %s26, 1
      %p285 = scmp.ne.s32.totalorder %s280, %s282
      %p286 = scmp.eq.s32.totalorder %s26, 0
      %p287 = por %p285, %p286
      %p288 = scmp.ne.s32.totalorder %s280, %s282
      %p289 = scmp.eq.s32.totalorder %s31, 1
      %p290 = por %p288, %p289
      %p291 = scmp.ne.s32.totalorder %s282, %s283
      %p292 = scmp.eq.s32.totalorder %s31, 0
      %p293 = por %p291, %p292
      %p294 = scmp.ne.s32.totalorder %s282, %s283
      %p295 = scmp.eq.s32.totalorder %s32, 1
      %p296 = por %p294, %p295
      %p298 = scmp.ne.s32.totalorder %s283, %s297
      %p299 = scmp.eq.s32.totalorder %s32, 0
      %p300 = por %p298, %p299
      %s302 = sadd.s32 %s301, 1
      %p305 = scmp.eq.s32.totalorder %s26, 1
      %p306 = scmp.ne.s32.totalorder %s301, %s303
      %p307 = scmp.eq.s32.totalorder %s26, 0
      %p308 = por %p306, %p307
      %p309 = scmp.ne.s32.totalorder %s301, %s303
      %p310 = scmp.eq.s32.totalorder %s31, 1
      %p311 = por %p309, %p310
      %p312 = scmp.ne.s32.totalorder %s303, %s304
      %p313 = scmp.eq.s32.totalorder %s31, 0
      %p314 = por %p312, %p313
      %p315 = scmp.ne.s32.totalorder %s303, %s304
      %p316 = scmp.eq.s32.totalorder %s32, 1
      %p317 = por %p315, %p316
      %p319 = scmp.ne.s32.totalorder %s304, %s318
      %p320 = scmp.eq.s32.totalorder %s32, 0
      %p321 = por %p319, %p320
      %s323 = sadd.s32 %s322, 1
      %p326 = scmp.eq.s32.totalorder %s26, 1
      %p327 = scmp.ne.s32.totalorder %s322, %s324
      %p328 = scmp.eq.s32.totalorder %s26, 0
      %p329 = por %p327, %p328
      %p330 = scmp.ne.s32.totalorder %s322, %s324
      %p331 = scmp.eq.s32.totalorder %s31, 1
      %p332 = por %p330, %p331
      %p333 = scmp.ne.s32.totalorder %s324, %s325
      %p334 = scmp.eq.s32.totalorder %s31, 0
      %p335 = por %p333, %p334
      %p336 = scmp.ne.s32.totalorder %s324, %s325
      %p337 = scmp.eq.s32.totalorder %s32, 1
      %p338 = por %p336, %p337
      %p340 = scmp.ne.s32.totalorder %s325, %s339
      %p341 = scmp.eq.s32.totalorder %s32, 0
      %p342 = por %p340, %p341
      %s343 = ssub.s32 %s26, %s33
      %p344 = scmp.eq.s32.totalorder %s343, 0
      %s346 = sadd.s32 %s345, 1
      %s347 = scalar_select %p344, %s345, %s346
      %p350 = pneg %p344
      %p351 = scmp.eq.s32.totalorder %s26, 1
      %p352 = por %p350, %p351
      %p353 = scmp.ne.s32.totalorder %s345, %s348
      %p354 = scmp.eq.s32.totalorder %s26, 0
      %p355 = por %p353, %p354
      %p356 = scmp.ne.s32.totalorder %s345, %s348
      %p357 = scmp.eq.s32.totalorder %s31, 1
      %p358 = por %p356, %p357
      %p359 = scmp.ne.s32.totalorder %s348, %s349
      %p360 = scmp.eq.s32.totalorder %s31, 0
      %p361 = por %p359, %p360
      %p362 = scmp.ne.s32.totalorder %s348, %s349
      %p363 = scmp.eq.s32.totalorder %s32, 1
      %p364 = por %p362, %p363
      %p366 = scmp.ne.s32.totalorder %s349, %s365
      %p367 = scmp.eq.s32.totalorder %s32, 0
      %p368 = por %p366, %p367
      %p369 = scmp.le.s32.totalorder 1, %s26
      %p370 = scmp.lt.s32.totalorder %s26, 3
      %p371 = pnand %p369, %p370
      %p372 = pneg %p371
      // Predicated region
      $region9: #{tpu_custom_call.1} parent=5 // pred_check
        _
      $region10: #{tpu_custom_call.1} parent=5 // pred_check_branch
        %374 = sbr.rel (%p371) target = $region12
      $region11: #{tpu_custom_call.1} parent=5 // pred_region
        %s375 = ssub.s32 %s26, 1
        // Predicated region
        $region13: #{tpu_custom_call.1} parent=11 // pred_check
          %p376 = pneg %p125
        $region14: #{tpu_custom_call.1} parent=11 // pred_check_branch
          %378 = sbr.rel (%p376) target = $region16
        $region15: #{tpu_custom_call.1} parent=11 // pred_region
          _
        $region16: #{tpu_custom_call.1} parent=11 // pred_fallthru
          _
        // Predicated region
        $region17: #{tpu_custom_call.1} parent=11 // pred_check
          %p379 = pneg %p146
        $region18: #{tpu_custom_call.1} parent=11 // pred_check_branch
          %381 = sbr.rel (%p379) target = $region20
        $region19: #{tpu_custom_call.1} parent=11 // pred_region
          _
        $region20: #{tpu_custom_call.1} parent=11 // pred_fallthru
          _
        // Predicated region
        $region21: #{tpu_custom_call.1} parent=11 // pred_check
          %p382 = pneg %p167
        $region22: #{tpu_custom_call.1} parent=11 // pred_check_branch
          %384 = sbr.rel (%p382) target = $region24
        $region23: #{tpu_custom_call.1} parent=11 // pred_region
          _
        $region24: #{tpu_custom_call.1} parent=11 // pred_fallthru
          _
        // Predicated region
        $region25: #{tpu_custom_call.1} parent=11 // pred_check
          %p385 = pneg %p188
        $region26: #{tpu_custom_call.1} parent=11 // pred_check_branch
          %387 = sbr.rel (%p385) target = $region28
        $region27: #{tpu_custom_call.1} parent=11 // pred_region
          _
        $region28: #{tpu_custom_call.1} parent=11 // pred_fallthru
          _
        // Predicated region
        $region29: #{tpu_custom_call.1} parent=11 // pred_check
          %p388 = pneg %p209
        $region30: #{tpu_custom_call.1} parent=11 // pred_check_branch
          %390 = sbr.rel (%p388) target = $region32
        $region31: #{tpu_custom_call.1} parent=11 // pred_region
          _
        $region32: #{tpu_custom_call.1} parent=11 // pred_fallthru
          _
        // Predicated region
        $region33: #{tpu_custom_call.1} parent=11 // pred_check
          %p391 = pneg %p230
        $region34: #{tpu_custom_call.1} parent=11 // pred_check_branch
          %393 = sbr.rel (%p391) target = $region36
        $region35: #{tpu_custom_call.1} parent=11 // pred_region
          _
        $region36: #{tpu_custom_call.1} parent=11 // pred_fallthru
          _
        // Predicated region
        $region37: #{tpu_custom_call.1} parent=11 // pred_check
          %p394 = pneg %p251
        $region38: #{tpu_custom_call.1} parent=11 // pred_check_branch
          %396 = sbr.rel (%p394) target = $region40
        $region39: #{tpu_custom_call.1} parent=11 // pred_region
          _
        $region40: #{tpu_custom_call.1} parent=11 // pred_fallthru
          _
        // Predicated region
        $region41: #{tpu_custom_call.1} parent=11 // pred_check
          %p397 = pneg %p272
        $region42: #{tpu_custom_call.1} parent=11 // pred_check_branch
          %399 = sbr.rel (%p397) target = $region44
        $region43: #{tpu_custom_call.1} parent=11 // pred_region
          _
        $region44: #{tpu_custom_call.1} parent=11 // pred_fallthru
          _
        // Predicated region
        $region45: #{tpu_custom_call.1} parent=11 // pred_check
          %p400 = pneg %p293
        $region46: #{tpu_custom_call.1} parent=11 // pred_check_branch
          %402 = sbr.rel (%p400) target = $region48
        $region47: #{tpu_custom_call.1} parent=11 // pred_region
          _
        $region48: #{tpu_custom_call.1} parent=11 // pred_fallthru
          _
        // Predicated region
        $region49: #{tpu_custom_call.1} parent=11 // pred_check
          %p403 = pneg %p314
        $region50: #{tpu_custom_call.1} parent=11 // pred_check_branch
          %405 = sbr.rel (%p403) target = $region52
        $region51: #{tpu_custom_call.1} parent=11 // pred_region
          _
        $region52: #{tpu_custom_call.1} parent=11 // pred_fallthru
          _
        // Predicated region
        $region53: #{tpu_custom_call.1} parent=11 // pred_check
          %p406 = pneg %p335
        $region54: #{tpu_custom_call.1} parent=11 // pred_check_branch
          %408 = sbr.rel (%p406) target = $region56
        $region55: #{tpu_custom_call.1} parent=11 // pred_region
          _
        $region56: #{tpu_custom_call.1} parent=11 // pred_fallthru
          _
      $region12: #{tpu_custom_call.1} parent=5 // pred_fallthru
        _
      %p409 = scmp.lt.s32.totalorder %s26, 2
      // Predicated region
      $region57: #{tpu_custom_call.1} parent=5 // pred_check
        %p410 = pneg %p409
      $region58: #{tpu_custom_call.1} parent=5 // pred_check_branch
        %412 = sbr.rel (%p410) target = $region60
      $region59: #{tpu_custom_call.1} parent=5 // pred_region
        // Predicated region
        $region61: #{tpu_custom_call.1} parent=59 // pred_check
          %p413 = pneg %p46
        $region62: #{tpu_custom_call.1} parent=59 // pred_check_branch
          %415 = sbr.rel (%p413) target = $region64
        $region63: #{tpu_custom_call.1} parent=59 // pred_region
          %p416 = scmp.lt.s32.totalorder %s26, 1
          %s417 = scalar_select %p416, %s26, 1
          %s418 = smul.addr %s417, 8
          %s419 = scalar_lea.vmem %s0, %s418
        $region64: #{tpu_custom_call.1} parent=59 // pred_fallthru
          _
        // Predicated region
        $region65: #{tpu_custom_call.1} parent=59 // pred_check
          %p420 = pneg %p72
        $region66: #{tpu_custom_call.1} parent=59 // pred_check_branch
          %422 = sbr.rel (%p420) target = $region68
        $region67: #{tpu_custom_call.1} parent=59 // pred_region
          %s423 = sand.u32 %s62, 1
          %s424 = scalar_lea.sflag [#allocation3], %s423
          %s425 = sand.u32 %s62, 1
          %s426 = smul.addr %s425, 8
          %s427 = scalar_lea.vmem [#allocation2], %s426
          %s429 = ssub.s32 128, 128
          %430 = vsyncadd %s424, %s429
          %s431 = smul.addr %s26, 128
          %s432 = scalar_lea.hbm %s1, %s431
          %s434 = sshll.u32 %s427, 4
          %s435 = int_to_ptr.vmem [resolvable:$true] %s434
          %437 = dma.hbm_to_vmem [thread:$0]  %s432, 128, %s435, %s424
        $region68: #{tpu_custom_call.1} parent=59 // pred_fallthru
          _
        // Predicated region
        $region69: #{tpu_custom_call.1} parent=59 // pred_check
          %p438 = pneg %p98
        $region70: #{tpu_custom_call.1} parent=59 // pred_check_branch
          %440 = sbr.rel (%p438) target = $region72
        $region71: #{tpu_custom_call.1} parent=59 // pred_region
          %p441 = scmp.lt.s32.totalorder %s26, 1
          %s442 = scalar_select %p441, %s26, 1
          %s443 = scalar_lea.vmem %s2, %s442
        $region72: #{tpu_custom_call.1} parent=59 // pred_fallthru
          _
      $region60: #{tpu_custom_call.1} parent=5 // pred_fallthru
        _
      %p444 = scmp.le.s32.totalorder 1, %s26
      %p445 = scmp.lt.s32.totalorder %s26, 3
      %p446 = pnand %p444, %p445
      %p447 = pneg %p446
      // Predicated region
      $region73: #{tpu_custom_call.1} parent=5 // pred_check
        _
      $region74: #{tpu_custom_call.1} parent=5 // pred_check_branch
        %449 = sbr.rel (%p446) target = $region76
      $region75: #{tpu_custom_call.1} parent=5 // pred_region
        %s450 = ssub.s32 %s26, 1
        %s451 = sand.u32 %s65, 1
        %s452 = scalar_lea.sflag [#allocation3], %s451
        %s453 = sand.u32 %s65, 1
        %s454 = smul.addr %s453, 8
        %s455 = scalar_lea.vmem [#allocation2], %s454
        // Predicated region
        $region77: #{tpu_custom_call.1} parent=75 // pred_check
          %p456 = pneg %p78
        $region78: #{tpu_custom_call.1} parent=75 // pred_check_branch
          %458 = sbr.rel (%p456) target = $region80
        $region79: #{tpu_custom_call.1} parent=75 // pred_region
          %459 = dma.done %s452, 128
        $region80: #{tpu_custom_call.1} parent=75 // pred_fallthru
          _
        %p460 = scmp.lt.s32.totalorder %s31, 1
        %s461 = scalar_select %p460, %s31, 1
        %s462 = smul.addr %s461, 8
        %s463 = scalar_lea.vmem %s0, %s462
        %p464 = pneg %p52
        %p465 = pneg %p49
        %s466 = sand.u32 %s65, 1
        %s467 = scalar_lea.sflag [#allocation3], %s466
        %s468 = sand.u32 %s65, 1
        %s469 = smul.addr %s468, 8
        %s470 = scalar_lea.vmem [#allocation2], %s469
        %p471 = pneg %p78
        %p472 = pneg %p75
        %p473 = scmp.lt.s32.totalorder %s31, 1
        %s474 = scalar_select %p473, %s31, 1
        %s475 = scalar_lea.vmem %s2, %s474
        %p476 = pneg %p104
        %p477 = pneg %p101
        %p478 = pneg %p125
        %p479 = pneg %p122
        %p480 = pneg %p146
        %p481 = pneg %p143
        %p482 = pneg %p167
        %p483 = pneg %p164
        %p484 = pneg %p188
        %p485 = pneg %p185
        %p486 = pneg %p209
        %p487 = pneg %p206
        %p488 = pneg %p230
        %p489 = pneg %p227
        %p490 = pneg %p251
        %p491 = pneg %p248
        %p492 = pneg %p272
        %p493 = pneg %p269
        %p494 = pneg %p293
        %p495 = pneg %p290
        %p496 = pneg %p314
        %p497 = pneg %p311
        %p498 = pneg %p335
        %p499 = pneg %p332
        %p500 = pneg %p361
        %p501 = pneg %p358
        %s502 = sand.u32 %s348, 1
        %s503 = scalar_lea.sflag [#allocation4], %s502
        %s504 = sand.u32 %s348, 1
        %s505 = smul.addr %s504, 8
        %s506 = scalar_lea.vmem [#allocation5], %s505
        %p507 = scmp.lt.s32.totalorder %s31, 1
        %s508 = scalar_select %p507, %s31, 1
        %s509 = smul.addr %s508, 8
        %s510 = scalar_lea.vmem %s0, %s509
        %p511 = scmp.lt.s32.totalorder %s31, 1
        %s512 = scalar_select %p511, %s31, 1
        %s513 = scalar_lea.vmem %s2, %s512
        %v514 = vld [vmem:[%s510] sm:$0xff]
        %v515 = vld [vmem:[%s455] sm:$0xff]
        %v516 = vld [vmem:[%s513] sm:$0x1]
        %v517 = vld [vmem:[%s3] sm:$0xff]
        %v518 = vld [vmem:[%s3 + $0x8] sm:$0xff]
        %v519 = vld [vmem:[%s3 + $0x10] sm:$0xff]
        %v520 = vld [vmem:[%s3 + $0x18] sm:$0xff]
        %vm521 = vcmask 261120
        %v523 = vsel %vm521, %v514, 0
        %525 = vmatprep.subr.mxu0 0.0
        %526 = vmatpush1.msra.mxu0 %v517
        %527 = vmatprep.subr.mxu0 0.0
        %528 = vmatpush1.msra.mxu0 %v518
        %529 = vmatprep.subr.mxu0 0.0
        %530 = vmatpush1.msra.mxu0 %v519
        %531 = vmatprep.subr.mxu0 0.0
        %532 = vmatpush1.msra.mxu0 %v520
        %533 = vmatprep.subr.mxu0 0.0
        %534 = vmatpush1.msra.mxu0 0.0
        %535 = vmatprep.subr.mxu0 0.0
        %536 = vmatpush1.msra.mxu0 0.0
        %537 = vmatprep.subr.mxu0 0.0
        %538 = vmatpush1.msra.mxu0 0.0
        %539 = vmatprep.subr.mxu0 0.0
        %540 = vmatpush1.msra.mxu0 0.0
        %541 = vmatprep.subr.mxu0 0.0
        %542 = vmatpush1.msra.mxu0 0.0
        %543 = vmatprep.subr.mxu0 0.0
        %544 = vmatpush1.msra.mxu0 0.0
        %545 = vmatprep.subr.mxu0 0.0
        %546 = vmatpush1.msra.mxu0 0.0
        %547 = vmatprep.subr.mxu0 0.0
        %548 = vmatpush1.msra.mxu0 0.0
        %549 = vmatprep.subr.mxu0 0.0
        %550 = vmatpush1.msra.mxu0 0.0
        %551 = vmatprep.subr.mxu0 0.0
        %552 = vmatpush1.msra.mxu0 0.0
        %553 = vmatprep.subr.mxu0 0.0
        %554 = vmatpush1.msra.mxu0 0.0
        %555 = vmatprep.subr.mxu0 0.0
        %556 = vmatpush1.msra.mxu0 0.0
        %557 = vmatprep.subr.mxu0 0.0
        %558 = vmatpush1.msra.mxu0 0.0
        %559 = vmatprep.subr.mxu0 0.0
        %560 = vmatpush1.msra.mxu0 0.0
        %561 = vmatprep.subr.mxu0 0.0
        %562 = vmatpush1.msra.mxu0 0.0
        %563 = vmatprep.subr.mxu0 0.0
        %564 = vmatpush1.msra.mxu0 0.0
        %565 = vmatprep.subr.mxu0 0.0
        %566 = vmatpush1.msra.mxu0 0.0
        %567 = vmatprep.subr.mxu0 0.0
        %568 = vmatpush1.msra.mxu0 0.0
        %569 = vmatprep.subr.mxu0 0.0
        %570 = vmatpush1.msra.mxu0 0.0
        %571 = vmatprep.subr.mxu0 0.0
        %572 = vmatpush1.msra.mxu0 0.0
        %573 = vmatprep.subr.mxu0 0.0
        %574 = vmatpush1.msra.mxu0 0.0
        %575 = vmatprep.subr.mxu0 0.0
        %576 = vmatpush1.msra.mxu0 0.0
        %577 = vmatprep.subr.mxu0 0.0
        %578 = vmatpush1.msra.mxu0 0.0
        %579 = vmatprep.subr.mxu0 0.0
        %580 = vmatpush1.msra.mxu0 0.0
        %581 = vmatprep.subr.mxu0 0.0
        %582 = vmatpush1.msra.mxu0 0.0
        %583 = vmatprep.subr.mxu0 0.0
        %584 = vmatpush1.msra.mxu0 0.0
        %585 = vmatprep.subr.mxu0 0.0
        %586 = vmatpush1.msra.mxu0 0.0
        %587 = vmatprep.subr.mxu0 0.0
        %588 = vmatpush1.msra.mxu0 0.0
        %589 = vmatprep.mubr.f32.mxu0 0.0
        %590 = vmatmul.mubr.f32.gmra.mrb[0].mxu0 %v523
        %v591 = vpop.f32.mrb[0].mxu0
        %v592 = vadd.f32 0.0, %v591
        %v593 = vpop.f32.mrb[0].mxu0
        %594 = vdwg.mxu0
        %v595 = vmul.f32 %v592, 0.25
        %v596 = vld [vmem:[%s4] sm:$0xff]
        %v597 = vld [vmem:[%s4 + $0x8] sm:$0xff]
        %v598 = vld [vmem:[%s4 + $0x10] sm:$0xff]
        %v599 = vld [vmem:[%s4 + $0x18] sm:$0xff]
        %v601 = vsel %vm521, %v515, 0
        %603 = vmatprep.subr.mxu0 0.0
        %604 = vmatpush1.msra.mxu0 %v596
        %605 = vmatprep.subr.mxu0 0.0
        %606 = vmatpush1.msra.mxu0 %v597
        %607 = vmatprep.subr.mxu0 0.0
        %608 = vmatpush1.msra.mxu0 %v598
        %609 = vmatprep.subr.mxu0 0.0
        %610 = vmatpush1.msra.mxu0 %v599
        %611 = vmatprep.subr.mxu0 0.0
        %612 = vmatpush1.msra.mxu0 0.0
        %613 = vmatprep.subr.mxu0 0.0
        %614 = vmatpush1.msra.mxu0 0.0
        %615 = vmatprep.subr.mxu0 0.0
        %616 = vmatpush1.msra.mxu0 0.0
        %617 = vmatprep.subr.mxu0 0.0
        %618 = vmatpush1.msra.mxu0 0.0
        %619 = vmatprep.subr.mxu0 0.0
        %620 = vmatpush1.msra.mxu0 0.0
        %621 = vmatprep.subr.mxu0 0.0
        %622 = vmatpush1.msra.mxu0 0.0
        %623 = vmatprep.subr.mxu0 0.0
        %624 = vmatpush1.msra.mxu0 0.0
        %625 = vmatprep.subr.mxu0 0.0
        %626 = vmatpush1.msra.mxu0 0.0
        %627 = vmatprep.subr.mxu0 0.0
        %628 = vmatpush1.msra.mxu0 0.0
        %629 = vmatprep.subr.mxu0 0.0
        %630 = vmatpush1.msra.mxu0 0.0
        %631 = vmatprep.subr.mxu0 0.0
        %632 = vmatpush1.msra.mxu0 0.0
        %633 = vmatprep.subr.mxu0 0.0
        %634 = vmatpush1.msra.mxu0 0.0
        %635 = vmatprep.subr.mxu0 0.0
        %636 = vmatpush1.msra.mxu0 0.0
        %637 = vmatprep.subr.mxu0 0.0
        %638 = vmatpush1.msra.mxu0 0.0
        %639 = vmatprep.subr.mxu0 0.0
        %640 = vmatpush1.msra.mxu0 0.0
        %641 = vmatprep.subr.mxu0 0.0
        %642 = vmatpush1.msra.mxu0 0.0
        %643 = vmatprep.subr.mxu0 0.0
        %644 = vmatpush1.msra.mxu0 0.0
        %645 = vmatprep.subr.mxu0 0.0
        %646 = vmatpush1.msra.mxu0 0.0
        %647 = vmatprep.subr.mxu0 0.0
        %648 = vmatpush1.msra.mxu0 0.0
        %649 = vmatprep.subr.mxu0 0.0
        %650 = vmatpush1.msra.mxu0 0.0
        %651 = vmatprep.subr.mxu0 0.0
        %652 = vmatpush1.msra.mxu0 0.0
        %653 = vmatprep.subr.mxu0 0.0
        %654 = vmatpush1.msra.mxu0 0.0
        %655 = vmatprep.subr.mxu0 0.0
        %656 = vmatpush1.msra.mxu0 0.0
        %657 = vmatprep.subr.mxu0 0.0
        %658 = vmatpush1.msra.mxu0 0.0
        %659 = vmatprep.subr.mxu0 0.0
        %660 = vmatpush1.msra.mxu0 0.0
        %661 = vmatprep.subr.mxu0 0.0
        %662 = vmatpush1.msra.mxu0 0.0
        %663 = vmatprep.subr.mxu0 0.0
        %664 = vmatpush1.msra.mxu0 0.0
        %665 = vmatprep.subr.mxu0 0.0
        %666 = vmatpush1.msra.mxu0 0.0
        %667 = vmatprep.mubr.f32.mxu0 0.0
        %668 = vmatmul.mubr.f32.gmra.mrb[0].mxu0 %v523
        %v669 = vpop.f32.mrb[0].mxu0
        %v670 = vadd.f32 0.0, %v669
        %v671 = vpop.f32.mrb[0].mxu0
        %672 = vmatprep.mubr.f32.mxu0 0.0
        %673 = vmatmul.mubr.f32.gmra.mrb[0].mxu0 %v601
        %v674 = vpop.f32.mrb[0].mxu0
        %v675 = vadd.f32 0.0, %v674
        %v676 = vpop.f32.mrb[0].mxu0
        %677 = vdwg.mxu0
        %v678 = vld [vmem:[%s5] sm:$0xff]
        %v679 = vld [vmem:[%s5 + $0x8] sm:$0xff]
        %v680 = vld [vmem:[%s5 + $0x10] sm:$0xff]
        %v681 = vld [vmem:[%s5 + $0x18] sm:$0xff]
        %682 = vmatprep.subr.mxu0 0.0
        %683 = vmatpush1.msra.mxu0 %v678
        %684 = vmatprep.subr.mxu0 0.0
        %685 = vmatpush1.msra.mxu0 %v679
        %686 = vmatprep.subr.mxu0 0.0
        %687 = vmatpush1.msra.mxu0 %v680
        %688 = vmatprep.subr.mxu0 0.0
        %689 = vmatpush1.msra.mxu0 %v681
        %690 = vmatprep.subr.mxu0 0.0
        %691 = vmatpush1.msra.mxu0 0.0
        %692 = vmatprep.subr.mxu0 0.0
        %693 = vmatpush1.msra.mxu0 0.0
        %694 = vmatprep.subr.mxu0 0.0
        %695 = vmatpush1.msra.mxu0 0.0
        %696 = vmatprep.subr.mxu0 0.0
        %697 = vmatpush1.msra.mxu0 0.0
        %698 = vmatprep.subr.mxu0 0.0
        %699 = vmatpush1.msra.mxu0 0.0
        %700 = vmatprep.subr.mxu0 0.0
        %701 = vmatpush1.msra.mxu0 0.0
        %702 = vmatprep.subr.mxu0 0.0
        %703 = vmatpush1.msra.mxu0 0.0
        %704 = vmatprep.subr.mxu0 0.0
        %705 = vmatpush1.msra.mxu0 0.0
        %706 = vmatprep.subr.mxu0 0.0
        %707 = vmatpush1.msra.mxu0 0.0
        %708 = vmatprep.subr.mxu0 0.0
        %709 = vmatpush1.msra.mxu0 0.0
        %710 = vmatprep.subr.mxu0 0.0
        %711 = vmatpush1.msra.mxu0 0.0
        %712 = vmatprep.subr.mxu0 0.0
        %713 = vmatpush1.msra.mxu0 0.0
        %714 = vmatprep.subr.mxu0 0.0
        %715 = vmatpush1.msra.mxu0 0.0
        %716 = vmatprep.subr.mxu0 0.0
        %717 = vmatpush1.msra.mxu0 0.0
        %718 = vmatprep.subr.mxu0 0.0
        %719 = vmatpush1.msra.mxu0 0.0
        %720 = vmatprep.subr.mxu0 0.0
        %721 = vmatpush1.msra.mxu0 0.0
        %722 = vmatprep.subr.mxu0 0.0
        %723 = vmatpush1.msra.mxu0 0.0
        %724 = vmatprep.subr.mxu0 0.0
        %725 = vmatpush1.msra.mxu0 0.0
        %726 = vmatprep.subr.mxu0 0.0
        %727 = vmatpush1.msra.mxu0 0.0
        %728 = vmatprep.subr.mxu0 0.0
        %729 = vmatpush1.msra.mxu0 0.0
        %730 = vmatprep.subr.mxu0 0.0
        %731 = vmatpush1.msra.mxu0 0.0
        %732 = vmatprep.subr.mxu0 0.0
        %733 = vmatpush1.msra.mxu0 0.0
        %734 = vmatprep.subr.mxu0 0.0
        %735 = vmatpush1.msra.mxu0 0.0
        %736 = vmatprep.subr.mxu0 0.0
        %737 = vmatpush1.msra.mxu0 0.0
        %738 = vmatprep.subr.mxu0 0.0
        %739 = vmatpush1.msra.mxu0 0.0
        %740 = vmatprep.subr.mxu0 0.0
        %741 = vmatpush1.msra.mxu0 0.0
        %742 = vmatprep.subr.mxu0 0.0
        %743 = vmatpush1.msra.mxu0 0.0
        %744 = vmatprep.subr.mxu0 0.0
        %745 = vmatpush1.msra.mxu0 0.0
        %746 = vmatprep.mubr.f32.mxu0 0.0
        %747 = vmatmul.mubr.f32.gmra.mrb[0].mxu0 %v523
        %v748 = vpop.f32.mrb[0].mxu0
        %v749 = vadd.f32 0.0, %v748
        %v750 = vpop.f32.mrb[0].mxu0
        %751 = vmatprep.mubr.f32.mxu0 0.0
        %752 = vmatmul.mubr.f32.gmra.mrb[0].mxu0 %v601
        %v753 = vpop.f32.mrb[0].mxu0
        %v754 = vadd.f32 0.0, %v753
        %v755 = vpop.f32.mrb[0].mxu0
        %756 = vdwg.mxu0
        %vm757 = vcmp.gt.f32.partialorder %v516, 0.5
        %v758 = vsel %vm757, 0.0, -1e+30
        %v760 = vlaneseq
        %v761 = vshrl.u32 %v760, 7
        %v762 = vsub.s32 0, %v761
        %v763 = vrot.slane %v758, %v762
        %vm765 = vcmask 130048
        %v767 = vsel %vm765, %v595, 0
        %v770 = vsel %vm765, %v670, 0
        %v773 = vsel %vm765, %v675, 0
        %775 = vmatprep.subr.mxu0 0.0
        %776 = vmatpush1.xpose.msra.mxu0 %v770
        %777 = vmatprep.subr.mxu0 0.0
        %778 = vmatpush1.xpose.msra.mxu0 %v773
        %779 = vmatprep.subr.mxu0 0.0
        %780 = vmatpush1.xpose.msra.mxu0 0.0
        %781 = vmatprep.subr.mxu0 0.0
        %782 = vmatpush1.xpose.msra.mxu0 0.0
        %783 = vmatprep.subr.mxu0 0.0
        %784 = vmatpush1.xpose.msra.mxu0 0.0
        %785 = vmatprep.subr.mxu0 0.0
        %786 = vmatpush1.xpose.msra.mxu0 0.0
        %787 = vmatprep.subr.mxu0 0.0
        %788 = vmatpush1.xpose.msra.mxu0 0.0
        %789 = vmatprep.subr.mxu0 0.0
        %790 = vmatpush1.xpose.msra.mxu0 0.0
        %791 = vmatprep.subr.mxu0 0.0
        %792 = vmatpush1.xpose.msra.mxu0 0.0
        %793 = vmatprep.subr.mxu0 0.0
        %794 = vmatpush1.xpose.msra.mxu0 0.0
        %795 = vmatprep.subr.mxu0 0.0
        %796 = vmatpush1.xpose.msra.mxu0 0.0
        %797 = vmatprep.subr.mxu0 0.0
        %798 = vmatpush1.xpose.msra.mxu0 0.0
        %799 = vmatprep.subr.mxu0 0.0
        %800 = vmatpush1.xpose.msra.mxu0 0.0
        %801 = vmatprep.subr.mxu0 0.0
        %802 = vmatpush1.xpose.msra.mxu0 0.0
        %803 = vmatprep.subr.mxu0 0.0
        %804 = vmatpush1.xpose.msra.mxu0 0.0
        %805 = vmatprep.subr.mxu0 0.0
        %806 = vmatpush1.xpose.msra.mxu0 0.0
        %807 = vmatprep.subr.mxu0 0.0
        %808 = vmatpush1.xpose.msra.mxu0 0.0
        %809 = vmatprep.subr.mxu0 0.0
        %810 = vmatpush1.xpose.msra.mxu0 0.0
        %811 = vmatprep.subr.mxu0 0.0
        %812 = vmatpush1.xpose.msra.mxu0 0.0
        %813 = vmatprep.subr.mxu0 0.0
        %814 = vmatpush1.xpose.msra.mxu0 0.0
        %815 = vmatprep.subr.mxu0 0.0
        %816 = vmatpush1.xpose.msra.mxu0 0.0
        %817 = vmatprep.subr.mxu0 0.0
        %818 = vmatpush1.xpose.msra.mxu0 0.0
        %819 = vmatprep.subr.mxu0 0.0
        %820 = vmatpush1.xpose.msra.mxu0 0.0
        %821 = vmatprep.subr.mxu0 0.0
        %822 = vmatpush1.xpose.msra.mxu0 0.0
        %823 = vmatprep.subr.mxu0 0.0
        %824 = vmatpush1.xpose.msra.mxu0 0.0
        %825 = vmatprep.subr.mxu0 0.0
        %826 = vmatpush1.xpose.msra.mxu0 0.0
        %827 = vmatprep.subr.mxu0 0.0
        %828 = vmatpush1.xpose.msra.mxu0 0.0
        %829 = vmatprep.subr.mxu0 0.0
        %830 = vmatpush1.xpose.msra.mxu0 0.0
        %831 = vmatprep.subr.mxu0 0.0
        %832 = vmatpush1.xpose.msra.mxu0 0.0
        %833 = vmatprep.subr.mxu0 0.0
        %834 = vmatpush1.xpose.msra.mxu0 0.0
        %835 = vmatprep.subr.mxu0 0.0
        %836 = vmatpush1.xpose.msra.mxu0 0.0
        %837 = vmatprep.subr.mxu0 0.0
        %838 = vmatpush1.xpose.msra.mxu0 0.0
        %839 = vmatprep.mubr.f32.mxu0 0.0
        %840 = vmatmul.mubr.f32.gmra.mrb[0].mxu0 %v767
        %v841 = vpop.f32.mrb[0].mxu0
        %v842 = vadd.f32 %v763, %v841
        %v843 = vpop.f32.mrb[0].mxu0
        %844 = vdwg.mxu0
        %v845 = vsel %vm765, %v842, -inf
        %846 = vmax.xlane.f32.xlu0 %v845
        %v847 = vpop.xlane.xlu0 %846
        %v848 = vsub.f32 %v842, %v847
        %v849 = vmul.f32 %v848, 1.442695
        %v850 = vpow.pop %v849
        %v851 = vsel %vm765, %v850, 0.0
        %852 = vadd.xlane.f32.xlu0 %v851
        %v853 = vpop.xlane.xlu0 %852
        %v855 = vsel %vm765, %v850, 0
        %857 = vmatprep.subr.mxu0 0.0
        %858 = vmatpush1.msra.mxu0 %v749
        %859 = vmatprep.subr.mxu0 0.0
        %860 = vmatpush1.msra.mxu0 %v754
        %861 = vmatprep.subr.mxu0 0.0
        %862 = vmatpush1.msra.mxu0 0.0
        %863 = vmatprep.subr.mxu0 0.0
        %864 = vmatpush1.msra.mxu0 0.0
        %865 = vmatprep.subr.mxu0 0.0
        %866 = vmatpush1.msra.mxu0 0.0
        %867 = vmatprep.subr.mxu0 0.0
        %868 = vmatpush1.msra.mxu0 0.0
        %869 = vmatprep.subr.mxu0 0.0
        %870 = vmatpush1.msra.mxu0 0.0
        %871 = vmatprep.subr.mxu0 0.0
        %872 = vmatpush1.msra.mxu0 0.0
        %873 = vmatprep.subr.mxu0 0.0
        %874 = vmatpush1.msra.mxu0 0.0
        %875 = vmatprep.subr.mxu0 0.0
        %876 = vmatpush1.msra.mxu0 0.0
        %877 = vmatprep.subr.mxu0 0.0
        %878 = vmatpush1.msra.mxu0 0.0
        %879 = vmatprep.subr.mxu0 0.0
        %880 = vmatpush1.msra.mxu0 0.0
        %881 = vmatprep.subr.mxu0 0.0
        %882 = vmatpush1.msra.mxu0 0.0
        %883 = vmatprep.subr.mxu0 0.0
        %884 = vmatpush1.msra.mxu0 0.0
        %885 = vmatprep.subr.mxu0 0.0
        %886 = vmatpush1.msra.mxu0 0.0
        %887 = vmatprep.subr.mxu0 0.0
        %888 = vmatpush1.msra.mxu0 0.0
        %889 = vmatprep.subr.mxu0 0.0
        %890 = vmatpush1.msra.mxu0 0.0
        %891 = vmatprep.subr.mxu0 0.0
        %892 = vmatpush1.msra.mxu0 0.0
        %893 = vmatprep.subr.mxu0 0.0
        %894 = vmatpush1.msra.mxu0 0.0
        %895 = vmatprep.subr.mxu0 0.0
        %896 = vmatpush1.msra.mxu0 0.0
        %897 = vmatprep.subr.mxu0 0.0
        %898 = vmatpush1.msra.mxu0 0.0
        %899 = vmatprep.subr.mxu0 0.0
        %900 = vmatpush1.msra.mxu0 0.0
        %901 = vmatprep.subr.mxu0 0.0
        %902 = vmatpush1.msra.mxu0 0.0
        %903 = vmatprep.subr.mxu0 0.0
        %904 = vmatpush1.msra.mxu0 0.0
        %905 = vmatprep.subr.mxu0 0.0
        %906 = vmatpush1.msra.mxu0 0.0
        %907 = vmatprep.subr.mxu0 0.0
        %908 = vmatpush1.msra.mxu0 0.0
        %909 = vmatprep.subr.mxu0 0.0
        %910 = vmatpush1.msra.mxu0 0.0
        %911 = vmatprep.subr.mxu0 0.0
        %912 = vmatpush1.msra.mxu0 0.0
        %913 = vmatprep.subr.mxu0 0.0
        %914 = vmatpush1.msra.mxu0 0.0
        %915 = vmatprep.subr.mxu0 0.0
        %916 = vmatpush1.msra.mxu0 0.0
        %917 = vmatprep.subr.mxu0 0.0
        %918 = vmatpush1.msra.mxu0 0.0
        %919 = vmatprep.subr.mxu0 0.0
        %920 = vmatpush1.msra.mxu0 0.0
        %921 = vmatprep.mubr.f32.mxu0 0.0
        %922 = vmatmul.mubr.f32.gmra.mrb[0].mxu0 %v855
        %v923 = vpop.f32.mrb[0].mxu0
        %v924 = vadd.f32 0.0, %v923
        %v925 = vpop.f32.mrb[0].mxu0
        %926 = vdwg.mxu0
        %v927 = vrcp.pop %v853
        %v928 = vmul.f32 %v924, %v927
        %929 = vrot.lane.b32.xlu0 %v595, 112
        %v930 = vpop.permute.xlu0 %929
        %931 = vrot.lane.b32.xlu0 %v670, 112
        %v932 = vpop.permute.xlu0 %931
        %933 = vrot.lane.b32.xlu0 %v675, 112
        %v934 = vpop.permute.xlu0 %933
        %v935 = vsel %vm765, %v930, 0
        %v937 = vsel %vm765, %v932, 0
        %v939 = vsel %vm765, %v934, 0
        %941 = vmatprep.subr.mxu0 0.0
        %942 = vmatpush1.xpose.msra.mxu0 %v937
        %943 = vmatprep.subr.mxu0 0.0
        %944 = vmatpush1.xpose.msra.mxu0 %v939
        %945 = vmatprep.subr.mxu0 0.0
        %946 = vmatpush1.xpose.msra.mxu0 0.0
        %947 = vmatprep.subr.mxu0 0.0
        %948 = vmatpush1.xpose.msra.mxu0 0.0
        %949 = vmatprep.subr.mxu0 0.0
        %950 = vmatpush1.xpose.msra.mxu0 0.0
        %951 = vmatprep.subr.mxu0 0.0
        %952 = vmatpush1.xpose.msra.mxu0 0.0
        %953 = vmatprep.subr.mxu0 0.0
        %954 = vmatpush1.xpose.msra.mxu0 0.0
        %955 = vmatprep.subr.mxu0 0.0
        %956 = vmatpush1.xpose.msra.mxu0 0.0
        %957 = vmatprep.subr.mxu0 0.0
        %958 = vmatpush1.xpose.msra.mxu0 0.0
        %959 = vmatprep.subr.mxu0 0.0
        %960 = vmatpush1.xpose.msra.mxu0 0.0
        %961 = vmatprep.subr.mxu0 0.0
        %962 = vmatpush1.xpose.msra.mxu0 0.0
        %963 = vmatprep.subr.mxu0 0.0
        %964 = vmatpush1.xpose.msra.mxu0 0.0
        %965 = vmatprep.subr.mxu0 0.0
        %966 = vmatpush1.xpose.msra.mxu0 0.0
        %967 = vmatprep.subr.mxu0 0.0
        %968 = vmatpush1.xpose.msra.mxu0 0.0
        %969 = vmatprep.subr.mxu0 0.0
        %970 = vmatpush1.xpose.msra.mxu0 0.0
        %971 = vmatprep.subr.mxu0 0.0
        %972 = vmatpush1.xpose.msra.mxu0 0.0
        %973 = vmatprep.subr.mxu0 0.0
        %974 = vmatpush1.xpose.msra.mxu0 0.0
        %975 = vmatprep.subr.mxu0 0.0
        %976 = vmatpush1.xpose.msra.mxu0 0.0
        %977 = vmatprep.subr.mxu0 0.0
        %978 = vmatpush1.xpose.msra.mxu0 0.0
        %979 = vmatprep.subr.mxu0 0.0
        %980 = vmatpush1.xpose.msra.mxu0 0.0
        %981 = vmatprep.subr.mxu0 0.0
        %982 = vmatpush1.xpose.msra.mxu0 0.0
        %983 = vmatprep.subr.mxu0 0.0
        %984 = vmatpush1.xpose.msra.mxu0 0.0
        %985 = vmatprep.subr.mxu0 0.0
        %986 = vmatpush1.xpose.msra.mxu0 0.0
        %987 = vmatprep.subr.mxu0 0.0
        %988 = vmatpush1.xpose.msra.mxu0 0.0
        %989 = vmatprep.subr.mxu0 0.0
        %990 = vmatpush1.xpose.msra.mxu0 0.0
        %991 = vmatprep.subr.mxu0 0.0
        %992 = vmatpush1.xpose.msra.mxu0 0.0
        %993 = vmatprep.subr.mxu0 0.0
        %994 = vmatpush1.xpose.msra.mxu0 0.0
        %995 = vmatprep.subr.mxu0 0.0
        %996 = vmatpush1.xpose.msra.mxu0 0.0
        %997 = vmatprep.subr.mxu0 0.0
        %998 = vmatpush1.xpose.msra.mxu0 0.0
        %999 = vmatprep.subr.mxu0 0.0
        %1000 = vmatpush1.xpose.msra.mxu0 0.0
        %1001 = vmatprep.subr.mxu0 0.0
        %1002 = vmatpush1.xpose.msra.mxu0 0.0
        %1003 = vmatprep.subr.mxu0 0.0
        %1004 = vmatpush1.xpose.msra.mxu0 0.0
        %1005 = vmatprep.mubr.f32.mxu0 0.0
        %1006 = vmatmul.mubr.f32.gmra.mrb[0].mxu0 %v935
        %v1007 = vpop.f32.mrb[0].mxu0
        %v1008 = vadd.f32 %v763, %v1007
        %v1009 = vpop.f32.mrb[0].mxu0
        %1010 = vdwg.mxu0
        %v1011 = vsel %vm765, %v1008, -inf
        %1012 = vmax.xlane.f32.xlu0 %v1011
        %v1013 = vpop.xlane.xlu0 %1012
        %v1014 = vsub.f32 %v1008, %v1013
        %v1015 = vmul.f32 %v1014, 1.442695
        %v1016 = vpow.pop %v1015
        %v1017 = vsel %vm765, %v1016, 0.0
        %1018 = vadd.xlane.f32.xlu0 %v1017
        %v1019 = vpop.xlane.xlu0 %1018
        %1022 = vrot.lane.b32.xlu0 %v749, 112
        %v1023 = vpop.permute.xlu0 %1022
        %1024 = vrot.lane.b32.xlu0 %v754, 112
        %v1025 = vpop.permute.xlu0 %1024
        %v1029 = vsel %vm765, %v1016, 0
        %1031 = vmatprep.subr.mxu0 0.0
        %1032 = vmatpush1.msra.mxu0 %v1023
        %1033 = vmatprep.subr.mxu0 0.0
        %1034 = vmatpush1.msra.mxu0 %v1025
        %1035 = vmatprep.subr.mxu0 0.0
        %1036 = vmatpush1.msra.mxu0 0.0
        %1037 = vmatprep.subr.mxu0 0.0
        %1038 = vmatpush1.msra.mxu0 0.0
        %1039 = vmatprep.subr.mxu0 0.0
        %1040 = vmatpush1.msra.mxu0 0.0
        %1041 = vmatprep.subr.mxu0 0.0
        %1042 = vmatpush1.msra.mxu0 0.0
        %1043 = vmatprep.subr.mxu0 0.0
        %1044 = vmatpush1.msra.mxu0 0.0
        %1045 = vmatprep.subr.mxu0 0.0
        %1046 = vmatpush1.msra.mxu0 0.0
        %1047 = vmatprep.subr.mxu0 0.0
        %1048 = vmatpush1.msra.mxu0 0.0
        %1049 = vmatprep.subr.mxu0 0.0
        %1050 = vmatpush1.msra.mxu0 0.0
        %1051 = vmatprep.subr.mxu0 0.0
        %1052 = vmatpush1.msra.mxu0 0.0
        %1053 = vmatprep.subr.mxu0 0.0
        %1054 = vmatpush1.msra.mxu0 0.0
        %1055 = vmatprep.subr.mxu0 0.0
        %1056 = vmatpush1.msra.mxu0 0.0
        %1057 = vmatprep.subr.mxu0 0.0
        %1058 = vmatpush1.msra.mxu0 0.0
        %1059 = vmatprep.subr.mxu0 0.0
        %1060 = vmatpush1.msra.mxu0 0.0
        %1061 = vmatprep.subr.mxu0 0.0
        %1062 = vmatpush1.msra.mxu0 0.0
        %1063 = vmatprep.subr.mxu0 0.0
        %1064 = vmatpush1.msra.mxu0 0.0
        %1065 = vmatprep.subr.mxu0 0.0
        %1066 = vmatpush1.msra.mxu0 0.0
        %1067 = vmatprep.subr.mxu0 0.0
        %1068 = vmatpush1.msra.mxu0 0.0
        %1069 = vmatprep.subr.mxu0 0.0
        %1070 = vmatpush1.msra.mxu0 0.0
        %1071 = vmatprep.subr.mxu0 0.0
        %1072 = vmatpush1.msra.mxu0 0.0
        %1073 = vmatprep.subr.mxu0 0.0
        %1074 = vmatpush1.msra.mxu0 0.0
        %1075 = vmatprep.subr.mxu0 0.0
        %1076 = vmatpush1.msra.mxu0 0.0
        %1077 = vmatprep.subr.mxu0 0.0
        %1078 = vmatpush1.msra.mxu0 0.0
        %1079 = vmatprep.subr.mxu0 0.0
        %1080 = vmatpush1.msra.mxu0 0.0
        %1081 = vmatprep.subr.mxu0 0.0
        %1082 = vmatpush1.msra.mxu0 0.0
        %1083 = vmatprep.subr.mxu0 0.0
        %1084 = vmatpush1.msra.mxu0 0.0
        %1085 = vmatprep.subr.mxu0 0.0
        %1086 = vmatpush1.msra.mxu0 0.0
        %1087 = vmatprep.subr.mxu0 0.0
        %1088 = vmatpush1.msra.mxu0 0.0
        %1089 = vmatprep.subr.mxu0 0.0
        %1090 = vmatpush1.msra.mxu0 0.0
        %1091 = vmatprep.subr.mxu0 0.0
        %1092 = vmatpush1.msra.mxu0 0.0
        %1093 = vmatprep.subr.mxu0 0.0
        %1094 = vmatpush1.msra.mxu0 0.0
        %1095 = vmatprep.mubr.f32.mxu0 0.0
        %1096 = vmatmul.mubr.f32.gmra.mrb[0].mxu0 %v1029
        %v1097 = vpop.f32.mrb[0].mxu0
        %v1098 = vadd.f32 0.0, %v1097
        %v1099 = vpop.f32.mrb[0].mxu0
        %1100 = vdwg.mxu0
        %v1101 = vrcp.pop %v1019
        %v1102 = vmul.f32 %v1098, %v1101
        %1103 = vrot.lane.b32.xlu0 %v595, 96
        %v1104 = vpop.permute.xlu0 %1103
        %1105 = vrot.lane.b32.xlu0 %v670, 96
        %v1106 = vpop.permute.xlu0 %1105
        %1107 = vrot.lane.b32.xlu0 %v675, 96
        %v1108 = vpop.permute.xlu0 %1107
        %v1109 = vsel %vm765, %v1104, 0
        %v1111 = vsel %vm765, %v1106, 0
        %v1113 = vsel %vm765, %v1108, 0
        %1115 = vmatprep.subr.mxu0 0.0
        %1116 = vmatpush1.xpose.msra.mxu0 %v1111
        %1117 = vmatprep.subr.mxu0 0.0
        %1118 = vmatpush1.xpose.msra.mxu0 %v1113
        %1119 = vmatprep.subr.mxu0 0.0
        %1120 = vmatpush1.xpose.msra.mxu0 0.0
        %1121 = vmatprep.subr.mxu0 0.0
        %1122 = vmatpush1.xpose.msra.mxu0 0.0
        %1123 = vmatprep.subr.mxu0 0.0
        %1124 = vmatpush1.xpose.msra.mxu0 0.0
        %1125 = vmatprep.subr.mxu0 0.0
        %1126 = vmatpush1.xpose.msra.mxu0 0.0
        %1127 = vmatprep.subr.mxu0 0.0
        %1128 = vmatpush1.xpose.msra.mxu0 0.0
        %1129 = vmatprep.subr.mxu0 0.0
        %1130 = vmatpush1.xpose.msra.mxu0 0.0
        %1131 = vmatprep.subr.mxu0 0.0
        %1132 = vmatpush1.xpose.msra.mxu0 0.0
        %1133 = vmatprep.subr.mxu0 0.0
        %1134 = vmatpush1.xpose.msra.mxu0 0.0
        %1135 = vmatprep.subr.mxu0 0.0
        %1136 = vmatpush1.xpose.msra.mxu0 0.0
        %1137 = vmatprep.subr.mxu0 0.0
        %1138 = vmatpush1.xpose.msra.mxu0 0.0
        %1139 = vmatprep.subr.mxu0 0.0
        %1140 = vmatpush1.xpose.msra.mxu0 0.0
        %1141 = vmatprep.subr.mxu0 0.0
        %1142 = vmatpush1.xpose.msra.mxu0 0.0
        %1143 = vmatprep.subr.mxu0 0.0
        %1144 = vmatpush1.xpose.msra.mxu0 0.0
        %1145 = vmatprep.subr.mxu0 0.0
        %1146 = vmatpush1.xpose.msra.mxu0 0.0
        %1147 = vmatprep.subr.mxu0 0.0
        %1148 = vmatpush1.xpose.msra.mxu0 0.0
        %1149 = vmatprep.subr.mxu0 0.0
        %1150 = vmatpush1.xpose.msra.mxu0 0.0
        %1151 = vmatprep.subr.mxu0 0.0
        %1152 = vmatpush1.xpose.msra.mxu0 0.0
        %1153 = vmatprep.subr.mxu0 0.0
        %1154 = vmatpush1.xpose.msra.mxu0 0.0
        %1155 = vmatprep.subr.mxu0 0.0
        %1156 = vmatpush1.xpose.msra.mxu0 0.0
        %1157 = vmatprep.subr.mxu0 0.0
        %1158 = vmatpush1.xpose.msra.mxu0 0.0
        %1159 = vmatprep.subr.mxu0 0.0
        %1160 = vmatpush1.xpose.msra.mxu0 0.0
        %1161 = vmatprep.subr.mxu0 0.0
        %1162 = vmatpush1.xpose.msra.mxu0 0.0
        %1163 = vmatprep.subr.mxu0 0.0
        %1164 = vmatpush1.xpose.msra.mxu0 0.0
        %1165 = vmatprep.subr.mxu0 0.0
        %1166 = vmatpush1.xpose.msra.mxu0 0.0
        %1167 = vmatprep.subr.mxu0 0.0
        %1168 = vmatpush1.xpose.msra.mxu0 0.0
        %1169 = vmatprep.subr.mxu0 0.0
        %1170 = vmatpush1.xpose.msra.mxu0 0.0
        %1171 = vmatprep.subr.mxu0 0.0
        %1172 = vmatpush1.xpose.msra.mxu0 0.0
        %1173 = vmatprep.subr.mxu0 0.0
        %1174 = vmatpush1.xpose.msra.mxu0 0.0
        %1175 = vmatprep.subr.mxu0 0.0
        %1176 = vmatpush1.xpose.msra.mxu0 0.0
        %1177 = vmatprep.subr.mxu0 0.0
        %1178 = vmatpush1.xpose.msra.mxu0 0.0
        %1179 = vmatprep.mubr.f32.mxu0 0.0
        %1180 = vmatmul.mubr.f32.gmra.mrb[0].mxu0 %v1109
        %v1181 = vpop.f32.mrb[0].mxu0
        %v1182 = vadd.f32 %v763, %v1181
        %v1183 = vpop.f32.mrb[0].mxu0
        %1184 = vdwg.mxu0
        %v1185 = vsel %vm765, %v1182, -inf
        %1186 = vmax.xlane.f32.xlu0 %v1185
        %v1187 = vpop.xlane.xlu0 %1186
        %v1188 = vsub.f32 %v1182, %v1187
        %v1189 = vmul.f32 %v1188, 1.442695
        %v1190 = vpow.pop %v1189
        %v1191 = vsel %vm765, %v1190, 0.0
        %1192 = vadd.xlane.f32.xlu0 %v1191
        %v1193 = vpop.xlane.xlu0 %1192
        %1194 = vrot.lane.b32.xlu0 %v749, 96
        %v1195 = vpop.permute.xlu0 %1194
        %1196 = vrot.lane.b32.xlu0 %v754, 96
        %v1197 = vpop.permute.xlu0 %1196
        %v1201 = vsel %vm765, %v1190, 0
        %1203 = vmatprep.subr.mxu0 0.0
        %1204 = vmatpush1.msra.mxu0 %v1195
        %1205 = vmatprep.subr.mxu0 0.0
        %1206 = vmatpush1.msra.mxu0 %v1197
        %1207 = vmatprep.subr.mxu0 0.0
        %1208 = vmatpush1.msra.mxu0 0.0
        %1209 = vmatprep.subr.mxu0 0.0
        %1210 = vmatpush1.msra.mxu0 0.0
        %1211 = vmatprep.subr.mxu0 0.0
        %1212 = vmatpush1.msra.mxu0 0.0
        %1213 = vmatprep.subr.mxu0 0.0
        %1214 = vmatpush1.msra.mxu0 0.0
        %1215 = vmatprep.subr.mxu0 0.0
        %1216 = vmatpush1.msra.mxu0 0.0
        %1217 = vmatprep.subr.mxu0 0.0
        %1218 = vmatpush1.msra.mxu0 0.0
        %1219 = vmatprep.subr.mxu0 0.0
        %1220 = vmatpush1.msra.mxu0 0.0
        %1221 = vmatprep.subr.mxu0 0.0
        %1222 = vmatpush1.msra.mxu0 0.0
        %1223 = vmatprep.subr.mxu0 0.0
        %1224 = vmatpush1.msra.mxu0 0.0
        %1225 = vmatprep.subr.mxu0 0.0
        %1226 = vmatpush1.msra.mxu0 0.0
        %1227 = vmatprep.subr.mxu0 0.0
        %1228 = vmatpush1.msra.mxu0 0.0
        %1229 = vmatprep.subr.mxu0 0.0
        %1230 = vmatpush1.msra.mxu0 0.0
        %1231 = vmatprep.subr.mxu0 0.0
        %1232 = vmatpush1.msra.mxu0 0.0
        %1233 = vmatprep.subr.mxu0 0.0
        %1234 = vmatpush1.msra.mxu0 0.0
        %1235 = vmatprep.subr.mxu0 0.0
        %1236 = vmatpush1.msra.mxu0 0.0
        %1237 = vmatprep.subr.mxu0 0.0
        %1238 = vmatpush1.msra.mxu0 0.0
        %1239 = vmatprep.subr.mxu0 0.0
        %1240 = vmatpush1.msra.mxu0 0.0
        %1241 = vmatprep.subr.mxu0 0.0
        %1242 = vmatpush1.msra.mxu0 0.0
        %1243 = vmatprep.subr.mxu0 0.0
        %1244 = vmatpush1.msra.mxu0 0.0
        %1245 = vmatprep.subr.mxu0 0.0
        %1246 = vmatpush1.msra.mxu0 0.0
        %1247 = vmatprep.subr.mxu0 0.0
        %1248 = vmatpush1.msra.mxu0 0.0
        %1249 = vmatprep.subr.mxu0 0.0
        %1250 = vmatpush1.msra.mxu0 0.0
        %1251 = vmatprep.subr.mxu0 0.0
        %1252 = vmatpush1.msra.mxu0 0.0
        %1253 = vmatprep.subr.mxu0 0.0
        %1254 = vmatpush1.msra.mxu0 0.0
        %1255 = vmatprep.subr.mxu0 0.0
        %1256 = vmatpush1.msra.mxu0 0.0
        %1257 = vmatprep.subr.mxu0 0.0
        %1258 = vmatpush1.msra.mxu0 0.0
        %1259 = vmatprep.subr.mxu0 0.0
        %1260 = vmatpush1.msra.mxu0 0.0
        %1261 = vmatprep.subr.mxu0 0.0
        %1262 = vmatpush1.msra.mxu0 0.0
        %1263 = vmatprep.subr.mxu0 0.0
        %1264 = vmatpush1.msra.mxu0 0.0
        %1265 = vmatprep.subr.mxu0 0.0
        %1266 = vmatpush1.msra.mxu0 0.0
        %1267 = vmatprep.mubr.f32.mxu0 0.0
        %1268 = vmatmul.mubr.f32.gmra.mrb[0].mxu0 %v1201
        %v1269 = vpop.f32.mrb[0].mxu0
        %v1270 = vadd.f32 0.0, %v1269
        %v1271 = vpop.f32.mrb[0].mxu0
        %1272 = vdwg.mxu0
        %v1273 = vrcp.pop %v1193
        %v1274 = vmul.f32 %v1270, %v1273
        %1275 = vrot.lane.b32.xlu0 %v595, 80
        %v1276 = vpop.permute.xlu0 %1275
        %1277 = vrot.lane.b32.xlu0 %v670, 80
        %v1278 = vpop.permute.xlu0 %1277
        %1279 = vrot.lane.b32.xlu0 %v675, 80
        %v1280 = vpop.permute.xlu0 %1279
        %v1281 = vsel %vm765, %v1276, 0
        %v1283 = vsel %vm765, %v1278, 0
        %v1285 = vsel %vm765, %v1280, 0
        %1287 = vmatprep.subr.mxu0 0.0
        %1288 = vmatpush1.xpose.msra.mxu0 %v1283
        %1289 = vmatprep.subr.mxu0 0.0
        %1290 = vmatpush1.xpose.msra.mxu0 %v1285
        %1291 = vmatprep.subr.mxu0 0.0
        %1292 = vmatpush1.xpose.msra.mxu0 0.0
        %1293 = vmatprep.subr.mxu0 0.0
        %1294 = vmatpush1.xpose.msra.mxu0 0.0
        %1295 = vmatprep.subr.mxu0 0.0
        %1296 = vmatpush1.xpose.msra.mxu0 0.0
        %1297 = vmatprep.subr.mxu0 0.0
        %1298 = vmatpush1.xpose.msra.mxu0 0.0
        %1299 = vmatprep.subr.mxu0 0.0
        %1300 = vmatpush1.xpose.msra.mxu0 0.0
        %1301 = vmatprep.subr.mxu0 0.0
        %1302 = vmatpush1.xpose.msra.mxu0 0.0
        %1303 = vmatprep.subr.mxu0 0.0
        %1304 = vmatpush1.xpose.msra.mxu0 0.0
        %1305 = vmatprep.subr.mxu0 0.0
        %1306 = vmatpush1.xpose.msra.mxu0 0.0
        %1307 = vmatprep.subr.mxu0 0.0
        %1308 = vmatpush1.xpose.msra.mxu0 0.0
        %1309 = vmatprep.subr.mxu0 0.0
        %1310 = vmatpush1.xpose.msra.mxu0 0.0
        %1311 = vmatprep.subr.mxu0 0.0
        %1312 = vmatpush1.xpose.msra.mxu0 0.0
        %1313 = vmatprep.subr.mxu0 0.0
        %1314 = vmatpush1.xpose.msra.mxu0 0.0
        %1315 = vmatprep.subr.mxu0 0.0
        %1316 = vmatpush1.xpose.msra.mxu0 0.0
        %1317 = vmatprep.subr.mxu0 0.0
        %1318 = vmatpush1.xpose.msra.mxu0 0.0
        %1319 = vmatprep.subr.mxu0 0.0
        %1320 = vmatpush1.xpose.msra.mxu0 0.0
        %1321 = vmatprep.subr.mxu0 0.0
        %1322 = vmatpush1.xpose.msra.mxu0 0.0
        %1323 = vmatprep.subr.mxu0 0.0
        %1324 = vmatpush1.xpose.msra.mxu0 0.0
        %1325 = vmatprep.subr.mxu0 0.0
        %1326 = vmatpush1.xpose.msra.mxu0 0.0
        %1327 = vmatprep.subr.mxu0 0.0
        %1328 = vmatpush1.xpose.msra.mxu0 0.0
        %1329 = vmatprep.subr.mxu0 0.0
        %1330 = vmatpush1.xpose.msra.mxu0 0.0
        %1331 = vmatprep.subr.mxu0 0.0
        %1332 = vmatpush1.xpose.msra.mxu0 0.0
        %1333 = vmatprep.subr.mxu0 0.0
        %1334 = vmatpush1.xpose.msra.mxu0 0.0
        %1335 = vmatprep.subr.mxu0 0.0
        %1336 = vmatpush1.xpose.msra.mxu0 0.0
        %1337 = vmatprep.subr.mxu0 0.0
        %1338 = vmatpush1.xpose.msra.mxu0 0.0
        %1339 = vmatprep.subr.mxu0 0.0
        %1340 = vmatpush1.xpose.msra.mxu0 0.0
        %1341 = vmatprep.subr.mxu0 0.0
        %1342 = vmatpush1.xpose.msra.mxu0 0.0
        %1343 = vmatprep.subr.mxu0 0.0
        %1344 = vmatpush1.xpose.msra.mxu0 0.0
        %1345 = vmatprep.subr.mxu0 0.0
        %1346 = vmatpush1.xpose.msra.mxu0 0.0
        %1347 = vmatprep.subr.mxu0 0.0
        %1348 = vmatpush1.xpose.msra.mxu0 0.0
        %1349 = vmatprep.subr.mxu0 0.0
        %1350 = vmatpush1.xpose.msra.mxu0 0.0
        %1351 = vmatprep.mubr.f32.mxu0 0.0
        %1352 = vmatmul.mubr.f32.gmra.mrb[0].mxu0 %v1281
        %v1353 = vpop.f32.mrb[0].mxu0
        %v1354 = vadd.f32 %v763, %v1353
        %v1355 = vpop.f32.mrb[0].mxu0
        %1356 = vdwg.mxu0
        %v1357 = vsel %vm765, %v1354, -inf
        %1358 = vmax.xlane.f32.xlu0 %v1357
        %v1359 = vpop.xlane.xlu0 %1358
        %v1360 = vsub.f32 %v1354, %v1359
        %v1361 = vmul.f32 %v1360, 1.442695
        %v1362 = vpow.pop %v1361
        %v1363 = vsel %vm765, %v1362, 0.0
        %1364 = vadd.xlane.f32.xlu0 %v1363
        %v1365 = vpop.xlane.xlu0 %1364
        %1366 = vrot.lane.b32.xlu0 %v749, 80
        %v1367 = vpop.permute.xlu0 %1366
        %1368 = vrot.lane.b32.xlu0 %v754, 80
        %v1369 = vpop.permute.xlu0 %1368
        %v1373 = vsel %vm765, %v1362, 0
        %1375 = vmatprep.subr.mxu0 0.0
        %1376 = vmatpush1.msra.mxu0 %v1367
        %1377 = vmatprep.subr.mxu0 0.0
        %1378 = vmatpush1.msra.mxu0 %v1369
        %1379 = vmatprep.subr.mxu0 0.0
        %1380 = vmatpush1.msra.mxu0 0.0
        %1381 = vmatprep.subr.mxu0 0.0
        %1382 = vmatpush1.msra.mxu0 0.0
        %1383 = vmatprep.subr.mxu0 0.0
        %1384 = vmatpush1.msra.mxu0 0.0
        %1385 = vmatprep.subr.mxu0 0.0
        %1386 = vmatpush1.msra.mxu0 0.0
        %1387 = vmatprep.subr.mxu0 0.0
        %1388 = vmatpush1.msra.mxu0 0.0
        %1389 = vmatprep.subr.mxu0 0.0
        %1390 = vmatpush1.msra.mxu0 0.0
        %1391 = vmatprep.subr.mxu0 0.0
        %1392 = vmatpush1.msra.mxu0 0.0
        %1393 = vmatprep.subr.mxu0 0.0
        %1394 = vmatpush1.msra.mxu0 0.0
        %1395 = vmatprep.subr.mxu0 0.0
        %1396 = vmatpush1.msra.mxu0 0.0
        %1397 = vmatprep.subr.mxu0 0.0
        %1398 = vmatpush1.msra.mxu0 0.0
        %1399 = vmatprep.subr.mxu0 0.0
        %1400 = vmatpush1.msra.mxu0 0.0
        %1401 = vmatprep.subr.mxu0 0.0
        %1402 = vmatpush1.msra.mxu0 0.0
        %1403 = vmatprep.subr.mxu0 0.0
        %1404 = vmatpush1.msra.mxu0 0.0
        %1405 = vmatprep.subr.mxu0 0.0
        %1406 = vmatpush1.msra.mxu0 0.0
        %1407 = vmatprep.subr.mxu0 0.0
        %1408 = vmatpush1.msra.mxu0 0.0
        %1409 = vmatprep.subr.mxu0 0.0
        %1410 = vmatpush1.msra.mxu0 0.0
        %1411 = vmatprep.subr.mxu0 0.0
        %1412 = vmatpush1.msra.mxu0 0.0
        %1413 = vmatprep.subr.mxu0 0.0
        %1414 = vmatpush1.msra.mxu0 0.0
        %1415 = vmatprep.subr.mxu0 0.0
        %1416 = vmatpush1.msra.mxu0 0.0
        %1417 = vmatprep.subr.mxu0 0.0
        %1418 = vmatpush1.msra.mxu0 0.0
        %1419 = vmatprep.subr.mxu0 0.0
        %1420 = vmatpush1.msra.mxu0 0.0
        %1421 = vmatprep.subr.mxu0 0.0
        %1422 = vmatpush1.msra.mxu0 0.0
        %1423 = vmatprep.subr.mxu0 0.0
        %1424 = vmatpush1.msra.mxu0 0.0
        %1425 = vmatprep.subr.mxu0 0.0
        %1426 = vmatpush1.msra.mxu0 0.0
        %1427 = vmatprep.subr.mxu0 0.0
        %1428 = vmatpush1.msra.mxu0 0.0
        %1429 = vmatprep.subr.mxu0 0.0
        %1430 = vmatpush1.msra.mxu0 0.0
        %1431 = vmatprep.subr.mxu0 0.0
        %1432 = vmatpush1.msra.mxu0 0.0
        %1433 = vmatprep.subr.mxu0 0.0
        %1434 = vmatpush1.msra.mxu0 0.0
        %1435 = vmatprep.subr.mxu0 0.0
        %1436 = vmatpush1.msra.mxu0 0.0
        %1437 = vmatprep.subr.mxu0 0.0
        %1438 = vmatpush1.msra.mxu0 0.0
        %1439 = vmatprep.mubr.f32.mxu0 0.0
        %1440 = vmatmul.mubr.f32.gmra.mrb[0].mxu0 %v1373
        %v1441 = vpop.f32.mrb[0].mxu0
        %v1442 = vadd.f32 0.0, %v1441
        %v1443 = vpop.f32.mrb[0].mxu0
        %1444 = vdwg.mxu0
        %v1445 = vrcp.pop %v1365
        %v1446 = vmul.f32 %v1442, %v1445
        %1448 = vrot.lane.b32.xlu0 %v1102, 16
        %v1449 = vpop.permute.xlu0 %1448
        %1452 = vrot.lane.b32.xlu0 %v1274, 32
        %v1453 = vpop.permute.xlu0 %1452
        %1456 = vrot.lane.b32.xlu0 %v1446, 48
        %v1457 = vpop.permute.xlu0 %1456
        %v1459 = vsel %vm765, %v928, %v1449
        %v1460 = vsel %vm521, %v1459, %v1453
        %vm1461 = vcmask 392192
        %v1462 = vsel %vm1461, %v1460, %v1457
        %v1463 = vld [vmem:[%s6] sm:$0xff]
        %v1464 = vld [vmem:[%s6 + $0x8] sm:$0xff]
        %v1465 = vld [vmem:[%s6 + $0x10] sm:$0xff]
        %v1466 = vld [vmem:[%s6 + $0x18] sm:$0xff]
        %v1467 = vld [vmem:[%s6 + $0x20] sm:$0xff]
        %v1468 = vld [vmem:[%s6 + $0x28] sm:$0xff]
        %v1469 = vld [vmem:[%s6 + $0x30] sm:$0xff]
        %v1470 = vld [vmem:[%s6 + $0x38] sm:$0xff]
        %vm1471 = vcmask 523264
        %v1473 = vsel %vm1471, %v1462, 0
        %1475 = vmatprep.subr.mxu0 0.0
        %1476 = vmatpush1.msra.mxu0 %v1463
        %1477 = vmatprep.subr.mxu0 0.0
        %1478 = vmatpush1.msra.mxu0 %v1464
        %1479 = vmatprep.subr.mxu0 0.0
        %1480 = vmatpush1.msra.mxu0 %v1465
        %1481 = vmatprep.subr.mxu0 0.0
        %1482 = vmatpush1.msra.mxu0 %v1466
        %1483 = vmatprep.subr.mxu0 0.0
        %1484 = vmatpush1.msra.mxu0 %v1467
        %1485 = vmatprep.subr.mxu0 0.0
        %1486 = vmatpush1.msra.mxu0 %v1468
        %1487 = vmatprep.subr.mxu0 0.0
        %1488 = vmatpush1.msra.mxu0 %v1469
        %1489 = vmatprep.subr.mxu0 0.0
        %1490 = vmatpush1.msra.mxu0 %v1470
        %1491 = vmatprep.subr.mxu0 0.0
        %1492 = vmatpush1.msra.mxu0 0.0
        %1493 = vmatprep.subr.mxu0 0.0
        %1494 = vmatpush1.msra.mxu0 0.0
        %1495 = vmatprep.subr.mxu0 0.0
        %1496 = vmatpush1.msra.mxu0 0.0
        %1497 = vmatprep.subr.mxu0 0.0
        %1498 = vmatpush1.msra.mxu0 0.0
        %1499 = vmatprep.subr.mxu0 0.0
        %1500 = vmatpush1.msra.mxu0 0.0
        %1501 = vmatprep.subr.mxu0 0.0
        %1502 = vmatpush1.msra.mxu0 0.0
        %1503 = vmatprep.subr.mxu0 0.0
        %1504 = vmatpush1.msra.mxu0 0.0
        %1505 = vmatprep.subr.mxu0 0.0
        %1506 = vmatpush1.msra.mxu0 0.0
        %1507 = vmatprep.subr.mxu0 0.0
        %1508 = vmatpush1.msra.mxu0 0.0
        %1509 = vmatprep.subr.mxu0 0.0
        %1510 = vmatpush1.msra.mxu0 0.0
        %1511 = vmatprep.subr.mxu0 0.0
        %1512 = vmatpush1.msra.mxu0 0.0
        %1513 = vmatprep.subr.mxu0 0.0
        %1514 = vmatpush1.msra.mxu0 0.0
        %1515 = vmatprep.subr.mxu0 0.0
        %1516 = vmatpush1.msra.mxu0 0.0
        %1517 = vmatprep.subr.mxu0 0.0
        %1518 = vmatpush1.msra.mxu0 0.0
        %1519 = vmatprep.subr.mxu0 0.0
        %1520 = vmatpush1.msra.mxu0 0.0
        %1521 = vmatprep.subr.mxu0 0.0
        %1522 = vmatpush1.msra.mxu0 0.0
        %1523 = vmatprep.subr.mxu0 0.0
        %1524 = vmatpush1.msra.mxu0 0.0
        %1525 = vmatprep.subr.mxu0 0.0
        %1526 = vmatpush1.msra.mxu0 0.0
        %1527 = vmatprep.subr.mxu0 0.0
        %1528 = vmatpush1.msra.mxu0 0.0
        %1529 = vmatprep.subr.mxu0 0.0
        %1530 = vmatpush1.msra.mxu0 0.0
        %1531 = vmatprep.subr.mxu0 0.0
        %1532 = vmatpush1.msra.mxu0 0.0
        %1533 = vmatprep.subr.mxu0 0.0
        %1534 = vmatpush1.msra.mxu0 0.0
        %1535 = vmatprep.subr.mxu0 0.0
        %1536 = vmatpush1.msra.mxu0 0.0
        %1537 = vmatprep.subr.mxu0 0.0
        %1538 = vmatpush1.msra.mxu0 0.0
        %1539 = vmatprep.mubr.f32.mxu0 0.0
        %1540 = vmatmul.mubr.f32.gmra.mrb[0].mxu0 %v1473
        %v1541 = vpop.f32.mrb[0].mxu0
        %v1542 = vadd.f32 %v514, %v1541
        %v1543 = vpop.f32.mrb[0].mxu0
        %1544 = vdwg.mxu0
        %v1545 = vld [vmem:[%s7] sm:$0xff]
        %v1546 = vld [vmem:[%s7 + $0x8] sm:$0xff]
        %v1547 = vld [vmem:[%s7 + $0x10] sm:$0xff]
        %v1548 = vld [vmem:[%s7 + $0x18] sm:$0xff]
        %v1549 = vld [vmem:[%s8] sm:$0x1]
        %v1551 = vlaneseq
        %v1552 = vshrl.u32 %v1551, 7
        %v1553 = vsub.s32 0, %v1552
        %v1554 = vrot.slane %v1549, %v1553
        %v1557 = vsel %vm521, %v1542, 0
        %1559 = vmatprep.subr.mxu0 0.0
        %1560 = vmatpush1.msra.mxu0 %v1545
        %1561 = vmatprep.subr.mxu0 0.0
        %1562 = vmatpush1.msra.mxu0 %v1546
        %1563 = vmatprep.subr.mxu0 0.0
        %1564 = vmatpush1.msra.mxu0 %v1547
        %1565 = vmatprep.subr.mxu0 0.0
        %1566 = vmatpush1.msra.mxu0 %v1548
        %1567 = vmatprep.subr.mxu0 0.0
        %1568 = vmatpush1.msra.mxu0 0.0
        %1569 = vmatprep.subr.mxu0 0.0
        %1570 = vmatpush1.msra.mxu0 0.0
        %1571 = vmatprep.subr.mxu0 0.0
        %1572 = vmatpush1.msra.mxu0 0.0
        %1573 = vmatprep.subr.mxu0 0.0
        %1574 = vmatpush1.msra.mxu0 0.0
        %1575 = vmatprep.subr.mxu0 0.0
        %1576 = vmatpush1.msra.mxu0 0.0
        %1577 = vmatprep.subr.mxu0 0.0
        %1578 = vmatpush1.msra.mxu0 0.0
        %1579 = vmatprep.subr.mxu0 0.0
        %1580 = vmatpush1.msra.mxu0 0.0
        %1581 = vmatprep.subr.mxu0 0.0
        %1582 = vmatpush1.msra.mxu0 0.0
        %1583 = vmatprep.subr.mxu0 0.0
        %1584 = vmatpush1.msra.mxu0 0.0
        %1585 = vmatprep.subr.mxu0 0.0
        %1586 = vmatpush1.msra.mxu0 0.0
        %1587 = vmatprep.subr.mxu0 0.0
        %1588 = vmatpush1.msra.mxu0 0.0
        %1589 = vmatprep.subr.mxu0 0.0
        %1590 = vmatpush1.msra.mxu0 0.0
        %1591 = vmatprep.subr.mxu0 0.0
        %1592 = vmatpush1.msra.mxu0 0.0
        %1593 = vmatprep.subr.mxu0 0.0
        %1594 = vmatpush1.msra.mxu0 0.0
        %1595 = vmatprep.subr.mxu0 0.0
        %1596 = vmatpush1.msra.mxu0 0.0
        %1597 = vmatprep.subr.mxu0 0.0
        %1598 = vmatpush1.msra.mxu0 0.0
        %1599 = vmatprep.subr.mxu0 0.0
        %1600 = vmatpush1.msra.mxu0 0.0
        %1601 = vmatprep.subr.mxu0 0.0
        %1602 = vmatpush1.msra.mxu0 0.0
        %1603 = vmatprep.subr.mxu0 0.0
        %1604 = vmatpush1.msra.mxu0 0.0
        %1605 = vmatprep.subr.mxu0 0.0
        %1606 = vmatpush1.msra.mxu0 0.0
        %1607 = vmatprep.subr.mxu0 0.0
        %1608 = vmatpush1.msra.mxu0 0.0
        %1609 = vmatprep.subr.mxu0 0.0
        %1610 = vmatpush1.msra.mxu0 0.0
        %1611 = vmatprep.subr.mxu0 0.0
        %1612 = vmatpush1.msra.mxu0 0.0
        %1613 = vmatprep.subr.mxu0 0.0
        %1614 = vmatpush1.msra.mxu0 0.0
        %1615 = vmatprep.subr.mxu0 0.0
        %1616 = vmatpush1.msra.mxu0 0.0
        %1617 = vmatprep.subr.mxu0 0.0
        %1618 = vmatpush1.msra.mxu0 0.0
        %1619 = vmatprep.subr.mxu0 0.0
        %1620 = vmatpush1.msra.mxu0 0.0
        %1621 = vmatprep.subr.mxu0 0.0
        %1622 = vmatpush1.msra.mxu0 0.0
        %1623 = vmatprep.mubr.f32.mxu0 0.0
        %1624 = vmatmul.mubr.f32.gmra.mrb[0].mxu0 %v1557
        %v1625 = vpop.f32.mrb[0].mxu0
        %v1626 = vadd.f32 %v1554, %v1625
        %v1627 = vpop.f32.mrb[0].mxu0
        %1628 = vdwg.mxu0
        %v1629 = vld [vmem:[%s9] sm:$0xff]
        %v1630 = vld [vmem:[%s9 + $0x8] sm:$0xff]
        %v1631 = vld [vmem:[%s9 + $0x10] sm:$0xff]
        %v1632 = vld [vmem:[%s9 + $0x18] sm:$0xff]
        %v1633 = vld [vmem:[%s10] sm:$0x1]
        %v1635 = vlaneseq
        %v1636 = vshrl.u32 %v1635, 7
        %v1637 = vsub.s32 0, %v1636
        %v1638 = vrot.slane %v1633, %v1637
        %1640 = vmatprep.subr.mxu0 0.0
        %1641 = vmatpush1.msra.mxu0 %v1629
        %1642 = vmatprep.subr.mxu0 0.0
        %1643 = vmatpush1.msra.mxu0 %v1630
        %1644 = vmatprep.subr.mxu0 0.0
        %1645 = vmatpush1.msra.mxu0 %v1631
        %1646 = vmatprep.subr.mxu0 0.0
        %1647 = vmatpush1.msra.mxu0 %v1632
        %1648 = vmatprep.subr.mxu0 0.0
        %1649 = vmatpush1.msra.mxu0 0.0
        %1650 = vmatprep.subr.mxu0 0.0
        %1651 = vmatpush1.msra.mxu0 0.0
        %1652 = vmatprep.subr.mxu0 0.0
        %1653 = vmatpush1.msra.mxu0 0.0
        %1654 = vmatprep.subr.mxu0 0.0
        %1655 = vmatpush1.msra.mxu0 0.0
        %1656 = vmatprep.subr.mxu0 0.0
        %1657 = vmatpush1.msra.mxu0 0.0
        %1658 = vmatprep.subr.mxu0 0.0
        %1659 = vmatpush1.msra.mxu0 0.0
        %1660 = vmatprep.subr.mxu0 0.0
        %1661 = vmatpush1.msra.mxu0 0.0
        %1662 = vmatprep.subr.mxu0 0.0
        %1663 = vmatpush1.msra.mxu0 0.0
        %1664 = vmatprep.subr.mxu0 0.0
        %1665 = vmatpush1.msra.mxu0 0.0
        %1666 = vmatprep.subr.mxu0 0.0
        %1667 = vmatpush1.msra.mxu0 0.0
        %1668 = vmatprep.subr.mxu0 0.0
        %1669 = vmatpush1.msra.mxu0 0.0
        %1670 = vmatprep.subr.mxu0 0.0
        %1671 = vmatpush1.msra.mxu0 0.0
        %1672 = vmatprep.subr.mxu0 0.0
        %1673 = vmatpush1.msra.mxu0 0.0
        %1674 = vmatprep.subr.mxu0 0.0
        %1675 = vmatpush1.msra.mxu0 0.0
        %1676 = vmatprep.subr.mxu0 0.0
        %1677 = vmatpush1.msra.mxu0 0.0
        %1678 = vmatprep.subr.mxu0 0.0
        %1679 = vmatpush1.msra.mxu0 0.0
        %1680 = vmatprep.subr.mxu0 0.0
        %1681 = vmatpush1.msra.mxu0 0.0
        %1682 = vmatprep.subr.mxu0 0.0
        %1683 = vmatpush1.msra.mxu0 0.0
        %1684 = vmatprep.subr.mxu0 0.0
        %1685 = vmatpush1.msra.mxu0 0.0
        %1686 = vmatprep.subr.mxu0 0.0
        %1687 = vmatpush1.msra.mxu0 0.0
        %1688 = vmatprep.subr.mxu0 0.0
        %1689 = vmatpush1.msra.mxu0 0.0
        %1690 = vmatprep.subr.mxu0 0.0
        %1691 = vmatpush1.msra.mxu0 0.0
        %1692 = vmatprep.subr.mxu0 0.0
        %1693 = vmatpush1.msra.mxu0 0.0
        %1694 = vmatprep.subr.mxu0 0.0
        %1695 = vmatpush1.msra.mxu0 0.0
        %1696 = vmatprep.subr.mxu0 0.0
        %1697 = vmatpush1.msra.mxu0 0.0
        %1698 = vmatprep.subr.mxu0 0.0
        %1699 = vmatpush1.msra.mxu0 0.0
        %1700 = vmatprep.subr.mxu0 0.0
        %1701 = vmatpush1.msra.mxu0 0.0
        %1702 = vmatprep.subr.mxu0 0.0
        %1703 = vmatpush1.msra.mxu0 0.0
        %1704 = vmatprep.mubr.f32.mxu0 0.0
        %1705 = vmatmul.mubr.f32.gmra.mrb[0].mxu0 %v1557
        %v1706 = vpop.f32.mrb[0].mxu0
        %v1707 = vadd.f32 %v1638, %v1706
        %v1708 = vpop.f32.mrb[0].mxu0
        %1709 = vdwg.mxu0
        %v1710 = vmul.f32 %v1707, 0.5
        %v1711 = vmul.f32 %v1707, 0.70710677
        %v1712 = vand.u32 2147483647, %v1711
        %v1713 = vmul.f32 %v1712, 0.3275911
        %v1714 = vadd.f32 %v1713, 1.0
        %v1715 = vrcp.pop %v1714
        %v1716 = vmul.f32 1.0, %v1715
        %v1717 = vmul.f32 %v1716, 1.0614054
        %v1718 = vadd.f32 %v1717, -1.4531521
        %v1719 = vmul.f32 %v1718, %v1716
        %v1720 = vadd.f32 %v1719, 1.4214138
        %v1721 = vmul.f32 %v1720, %v1716
        %v1722 = vadd.f32 %v1721, -0.28449672
        %v1723 = vmul.f32 %v1722, %v1716
        %v1724 = vadd.f32 %v1723, 0.2548296
        %v1725 = vmul.f32 %v1724, %v1716
        %v1726 = vsub.f32 0.0, %v1712
        %v1727 = vmul.f32 %v1726, %v1712
        %v1728 = vmul.f32 %v1727, 1.442695
        %v1729 = vpow.pop %v1728
        %v1730 = vmul.f32 %v1725, %v1729
        %v1731 = vsub.f32 1.0, %v1730
        %vm1732 = vcmp.ge.f32.partialorder %v1711, 0.0
        %v1733 = vsub.f32 0.0, %v1731
        %v1734 = vsel %vm1732, %v1731, %v1733
        %v1735 = vadd.f32 %v1734, 1.0
        %v1736 = vmul.f32 %v1710, %v1735
        %v1737 = vmul.f32 %v1736, %v1626
        %v1738 = vld [vmem:[%s11] sm:$0xff]
        %v1739 = vld [vmem:[%s11 + $0x8] sm:$0xff]
        %v1740 = vld [vmem:[%s11 + $0x10] sm:$0xff]
        %v1741 = vld [vmem:[%s11 + $0x18] sm:$0xff]
        %v1742 = vld [vmem:[%s11 + $0x20] sm:$0xff]
        %v1743 = vld [vmem:[%s11 + $0x28] sm:$0xff]
        %v1744 = vld [vmem:[%s11 + $0x30] sm:$0xff]
        %v1745 = vld [vmem:[%s11 + $0x38] sm:$0xff]
        %v1746 = vld [vmem:[%s11 + $0x40] sm:$0xff]
        %v1747 = vld [vmem:[%s11 + $0x48] sm:$0xff]
        %v1748 = vld [vmem:[%s11 + $0x50] sm:$0x1f]
        %v1749 = vld [vmem:[%s12] sm:$0x1]
        %v1751 = vlaneseq
        %v1752 = vshrl.u32 %v1751, 7
        %v1753 = vsub.s32 0, %v1752
        %v1754 = vrot.slane %v1749, %v1753
        %vm1756 = vcmask 695296
        %v1758 = vsel %vm1756, %v1737, 0
        %vm1760 = vcmask 1044480
        %v1762 = vsel %vm1760, %v1748, 0
        %1764 = vmatprep.subr.mxu0 0.0
        %1765 = vmatpush1.msra.mxu0 %v1738
        %1766 = vmatprep.subr.mxu0 0.0
        %1767 = vmatpush1.msra.mxu0 %v1739
        %1768 = vmatprep.subr.mxu0 0.0
        %1769 = vmatpush1.msra.mxu0 %v1740
        %1770 = vmatprep.subr.mxu0 0.0
        %1771 = vmatpush1.msra.mxu0 %v1741
        %1772 = vmatprep.subr.mxu0 0.0
        %1773 = vmatpush1.msra.mxu0 %v1742
        %1774 = vmatprep.subr.mxu0 0.0
        %1775 = vmatpush1.msra.mxu0 %v1743
        %1776 = vmatprep.subr.mxu0 0.0
        %1777 = vmatpush1.msra.mxu0 %v1744
        %1778 = vmatprep.subr.mxu0 0.0
        %1779 = vmatpush1.msra.mxu0 %v1745
        %1780 = vmatprep.subr.mxu0 0.0
        %1781 = vmatpush1.msra.mxu0 %v1746
        %1782 = vmatprep.subr.mxu0 0.0
        %1783 = vmatpush1.msra.mxu0 %v1747
        %1784 = vmatprep.subr.mxu0 0.0
        %1785 = vmatpush1.msra.mxu0 %v1762
        %1786 = vmatprep.subr.mxu0 0.0
        %1787 = vmatpush1.msra.mxu0 0.0
        %1788 = vmatprep.subr.mxu0 0.0
        %1789 = vmatpush1.msra.mxu0 0.0
        %1790 = vmatprep.subr.mxu0 0.0
        %1791 = vmatpush1.msra.mxu0 0.0
        %1792 = vmatprep.subr.mxu0 0.0
        %1793 = vmatpush1.msra.mxu0 0.0
        %1794 = vmatprep.subr.mxu0 0.0
        %1795 = vmatpush1.msra.mxu0 0.0
        %1796 = vmatprep.subr.mxu0 0.0
        %1797 = vmatpush1.msra.mxu0 0.0
        %1798 = vmatprep.subr.mxu0 0.0
        %1799 = vmatpush1.msra.mxu0 0.0
        %1800 = vmatprep.subr.mxu0 0.0
        %1801 = vmatpush1.msra.mxu0 0.0
        %1802 = vmatprep.subr.mxu0 0.0
        %1803 = vmatpush1.msra.mxu0 0.0
        %1804 = vmatprep.subr.mxu0 0.0
        %1805 = vmatpush1.msra.mxu0 0.0
        %1806 = vmatprep.subr.mxu0 0.0
        %1807 = vmatpush1.msra.mxu0 0.0
        %1808 = vmatprep.subr.mxu0 0.0
        %1809 = vmatpush1.msra.mxu0 0.0
        %1810 = vmatprep.subr.mxu0 0.0
        %1811 = vmatpush1.msra.mxu0 0.0
        %1812 = vmatprep.subr.mxu0 0.0
        %1813 = vmatpush1.msra.mxu0 0.0
        %1814 = vmatprep.subr.mxu0 0.0
        %1815 = vmatpush1.msra.mxu0 0.0
        %1816 = vmatprep.subr.mxu0 0.0
        %1817 = vmatpush1.msra.mxu0 0.0
        %1818 = vmatprep.subr.mxu0 0.0
        %1819 = vmatpush1.msra.mxu0 0.0
        %1820 = vmatprep.subr.mxu0 0.0
        %1821 = vmatpush1.msra.mxu0 0.0
        %1822 = vmatprep.subr.mxu0 0.0
        %1823 = vmatpush1.msra.mxu0 0.0
        %1824 = vmatprep.subr.mxu0 0.0
        %1825 = vmatpush1.msra.mxu0 0.0
        %1826 = vmatprep.subr.mxu0 0.0
        %1827 = vmatpush1.msra.mxu0 0.0
        %1828 = vmatprep.mubr.f32.mxu0 0.0
        %1829 = vmatmul.mubr.f32.gmra.mrb[0].mxu0 %v1758
        %v1830 = vpop.f32.mrb[0].mxu0
        %v1831 = vadd.f32 %v1754, %v1830
        %v1832 = vpop.f32.mrb[0].mxu0
        %1833 = vdwg.mxu0
        %v1834 = vadd.f32 %v1831, %v1542
        %1835 = vst.msk [vmem:[%s506] sm:$0xff] %vm521, %v1834
        %s1836 = sand.u32 %s348, 1
        %s1837 = scalar_lea.sflag [#allocation4], %s1836
        %s1838 = sand.u32 %s348, 1
        %s1839 = smul.addr %s1838, 8
        %s1840 = scalar_lea.vmem [#allocation5], %s1839
        // Predicated region
        $region81: #{tpu_custom_call.1} parent=75 // pred_check
          %p1841 = pneg %p358
        $region82: #{tpu_custom_call.1} parent=75 // pred_check_branch
          %1843 = sbr.rel (%p1841) target = $region84
        $region83: #{tpu_custom_call.1} parent=75 // pred_region
          %s1845 = ssub.s32 128, 128
          %1846 = vsyncadd %s1837, %s1845
          %s1847 = smul.addr %s31, 128
          %s1848 = scalar_lea.hbm %s14, %s1847
          %s1850 = sshll.u32 %s1840, 4
          %s1851 = int_to_ptr.vmem [resolvable:$true] %s1850
          %1853 = dma.vmem_to_hbm [thread:$0]  %s1851, 128, %s1848, %s1837
        $region84: #{tpu_custom_call.1} parent=75 // pred_fallthru
          _
      $region76: #{tpu_custom_call.1} parent=5 // pred_fallthru
        _
      %p1854 = scmp.le.s32.totalorder 2, %s26
      // Predicated region
      $region85: #{tpu_custom_call.1} parent=5 // pred_check
        %p1855 = pneg %p1854
      $region86: #{tpu_custom_call.1} parent=5 // pred_check_branch
        %1857 = sbr.rel (%p1855) target = $region88
      $region87: #{tpu_custom_call.1} parent=5 // pred_region
        %s1858 = ssub.s32 %s26, 2
        // Predicated region
        $region89: #{tpu_custom_call.1} parent=87 // pred_check
          %p1859 = pneg %p364
        $region90: #{tpu_custom_call.1} parent=87 // pred_check_branch
          %1861 = sbr.rel (%p1859) target = $region92
        $region91: #{tpu_custom_call.1} parent=87 // pred_region
          %s1862 = sand.u32 %s349, 1
          %s1863 = scalar_lea.sflag [#allocation4], %s1862
          %s1864 = sand.u32 %s349, 1
          %s1865 = smul.addr %s1864, 8
          %s1866 = scalar_lea.vmem [#allocation5], %s1865
          %1867 = dma.done %s1863, 128
        $region92: #{tpu_custom_call.1} parent=87 // pred_fallthru
          _
      $region88: #{tpu_custom_call.1} parent=5 // pred_fallthru
        _
    $region6: #{tpu_custom_call.1} parent=1 // loop_footer
      %s30 = sadd.s32 1, %s26
    $region7: #{tpu_custom_call.1} parent=1 // loop_footer_branch
      %25 = sbr.rel target = $region3
    $region8: #{tpu_custom_call.1} parent=1 // loop_exit
      _
    %1868 = vsyncpa [#allocation3], 1
    %s1869 = scalar_lea.sflag [#allocation3], 1
    %1870 = vsyncpa %s1869, 1
    %1871 = vsyncpa [#allocation4], 1
    %s1872 = scalar_lea.sflag [#allocation4], 1
    %1873 = vsyncpa %s1872, 1

</llo_original>
